<compile_context>
chip_gen: v5e
topology: v5e:2x2
jax: 0.10.0
libtpu: 0.0.40
codegen_flags: <defaults>
</compile_context>

<pallas_src>
import math

import jax
import jax.numpy as jnp
from jax import lax
from jax.experimental import pallas as pl
from jax.experimental.pallas import tpu as pltpu


# ----------------------------------------------------------------------------
# Pallas kernel
# ----------------------------------------------------------------------------
def grud_encoder_kernel(
    p_ref,              # (T, Bb, 4D) packed [x | x_last | mask | delta]
    xm_ref,             # (1, D)      per-feature observed mean
    gx_ref,             # (2, D)      row0 = diag(W_gx), row1 = b_gx
    wgh_ref, bgh_ref,   # (D, H), (1, H)   gamma_h linear
    wx_ref,             # (D, 3H)     x_hat contribution to [z | r | h~]
    wm_ref,             # (D, 3H)     mask  contribution to [z | r | h~]
    b_ref,              # (1, 3H)     fused gate biases
    whzr_ref,           # (H, 2H)     hidden contribution to [z | r] (fused)
    whh_ref,            # (H, H)      hidden contribution to candidate
    av_ref,             # (1, H)      attn_v / sqrt(H)
    c_ref,              # out (Bb, H)
    pre_ref,            # scratch (T*Bb, 3H)  precomputed gate pre-activations
    dh_ref,             # scratch (T*Bb, H)   precomputed hidden decay
):
    T, Bb, D4 = p_ref.shape
    D = D4 // 4
    H = c_ref.shape[1]

    # ---------------- Phase 1: h-independent work, batched over T*Bb ---------
    p = p_ref[...].reshape(T * Bb, D4)          # layout-preserving leading collapse
    x = p[:, :D]
    xl = p[:, D:2 * D]
    m = p[:, 2 * D:3 * D]
    dl = p[:, 3 * D:]

    gx_diag = gx_ref[0:1, :]                    # (1, D)
    gx_bias = gx_ref[1:2, :]                    # (1, D)
    xmean = xm_ref[...]                         # (1, D)

    # input decay + GRU-D imputation
    delta_x = jnp.exp(-jnp.maximum(0.0, dl * gx_diag + gx_bias))
    x_hat = m * x + (1.0 - m) * (delta_x * xl + (1.0 - delta_x) * xmean)

    # fused [z | r | h~] input/mask pre-activations, biases folded in
    pre_ref[...] = (
        jnp.dot(x_hat, wx_ref[...], preferred_element_type=jnp.float32)
        + jnp.dot(m, wm_ref[...], preferred_element_type=jnp.float32)
        + b_ref[...])

    # hidden-state decay for every timestep
    dh_ref[...] = jnp.exp(-jnp.maximum(
        0.0,
        jnp.dot(dl, wgh_ref[...], preferred_element_type=jnp.float32) + bgh_ref[...]))

    whzr = whzr_ref[...]
    whh = whh_ref[...]
    av = av_ref[...]                            # already scaled by 1/sqrt(H)

    # ---------------- Phase 2: serial recurrence + online-softmax pooling ----
    def step(ti, carry):
        h, ms, ls, acc = carry
        row = pl.multiple_of(ti * Bb, Bb)
        pre = pre_ref[pl.ds(row, Bb), :]        # (Bb, 3H)
        dht = dh_ref[pl.ds(row, Bb), :]         # (Bb, H)

        hd = dht * h
        zr = jnp.dot(hd, whzr, preferred_element_type=jnp.float32)   # (Bb, 2H)
        z = jax.nn.sigmoid(pre[:, :H] + zr[:, :H])
        r = jax.nn.sigmoid(pre[:, H:2 * H] + zr[:, H:])
        h_tilde = jnp.tanh(
            pre[:, 2 * H:] + jnp.dot(r * hd, whh, preferred_element_type=jnp.float32))
        h_new = (1.0 - z) * hd + z * h_tilde

        # online softmax over time (per batch row)
        score = jnp.sum(h_new * av, axis=-1, keepdims=True)          # (Bb, 1)
        m_new = jnp.maximum(ms, score)
        alpha = jnp.exp(ms - m_new)
        pexp = jnp.exp(score - m_new)
        return (h_new, m_new, alpha * ls + pexp, alpha * acc + pexp * h_new)

    h0 = jnp.zeros((Bb, H), jnp.float32)                  # GRUD.initHidden
    ms0 = jnp.full((Bb, 1), -jnp.inf, jnp.float32)
    ls0 = jnp.zeros((Bb, 1), jnp.float32)
    acc0 = jnp.zeros((Bb, H), jnp.float32)

    unroll = True if T <= 32 else 8
    _, _, lsf, accf = lax.fori_loop(0, T, step, (h0, ms0, ls0, acc0), unroll=unroll)

    c_ref[...] = accf * pl.reciprocal(lsf, approx=True)


# ----------------------------------------------------------------------------
# Parameter init (matches the PyTorch module's parameter shapes)
# ----------------------------------------------------------------------------
def init_params(key, D, H):
    ks = jax.random.split(key, 10)

    def u(k, fan_in, shape):
        b = 1.0 / math.sqrt(fan_in)
        return jax.random.uniform(k, shape, jnp.float32, -b, b)

    fan = 2 * D + H                   # Linear(input + hidden + mask, hidden)
    return {
        "Wz": u(ks[0], fan, (H, fan)), "bz": u(ks[1], fan, (H,)),
        "Wr": u(ks[2], fan, (H, fan)), "br": u(ks[3], fan, (H,)),
        "Wh": u(ks[4], fan, (H, fan)), "bh": u(ks[5], fan, (H,)),
        "Wgx": u(ks[6], D, (D, D)),    "bgx": u(ks[7], D, (D,)),   # FilterLinear
        "Wgh": u(ks[8], D, (H, D)),    "bgh": u(ks[9], D, (H,)),   # gamma_h_l
        "attn_v": jnp.ones((H,), jnp.float32),                     # ones per __init__
    }


# ----------------------------------------------------------------------------
# Reconstructed GRU-D preprocessing (plain-JAX glue, as in the torch module's
# grud.get_input_for_grud call outside the recurrence).
# ----------------------------------------------------------------------------
def get_input_for_grud(t, x, mask):
    T, B, D = x.shape
    xm = x * mask

    denom = jnp.maximum(jnp.sum(mask, axis=(0, 1)), 1.0)
    x_mean = (jnp.sum(xm, axis=(0, 1)) / denom).reshape(1, D)

    dt = t[1:] - t[:-1]                                           # (T-1, B)

    def scan_fn(carry, inp):
        xl_prev, dl_prev = carry
        x_prev, m_prev, dt_t = inp
        xl_t = m_prev * x_prev + (1.0 - m_prev) * xl_prev         # forward fill
        dl_t = dt_t[:, None] + (1.0 - m_prev) * dl_prev           # time since obs
        return (xl_t, dl_t), (xl_t, dl_t)

    init = (xm[0], jnp.zeros((B, D), jnp.float32))
    _, (xl_rest, dl_rest) = lax.scan(scan_fn, init, (xm[:-1], mask[:-1], dt))
    x_last = jnp.concatenate([xm[0:1], xl_rest], axis=0)          # (T,B,D)
    delta = jnp.concatenate([jnp.zeros((1, B, D), jnp.float32), dl_rest], axis=0)
    return xm, x_last, mask, delta, x_mean


# ----------------------------------------------------------------------------
# Wrapper: weight repacking + pallas_call
# ----------------------------------------------------------------------------
def _weight_specs(arrs):
    specs = []
    for a in arrs:
        n = a.ndim
        specs.append(pl.BlockSpec(a.shape, lambda b, _n=n: (0,) * _n))
    return specs


def grud_encoder_forward(params, x, t, mask, *, block_b=None):
    T, B, D = x.shape
    H = params["attn_v"].shape[0]

    X, XL, M, DL, XM = get_input_for_grud(t, x, mask)
    # single lane-packed data stream (one DMA / double-buffer instead of four)
    P = jnp.concatenate([X, XL, M, DL], axis=-1)                  # (T, B, 4D)

    def split(W):                        # Linear over cat((x, h, mask)) -> 3 blocks
        Wt = W.T                                                  # (2D+H, H)
        return Wt[:D], Wt[D:D + H], Wt[D + H:]

    wzx, wzh, wzm = split(params["Wz"])
    wrx, wrh, wrm = split(params["Wr"])
    whx, whh, whm = split(params["Wh"])

    Wx_all = jnp.concatenate([wzx, wrx, whx], axis=1)             # (D, 3H)
    Wm_all = jnp.concatenate([wzm, wrm, whm], axis=1)             # (D, 3H)
    b_all = jnp.concatenate(
        [params["bz"], params["br"], params["bh"]]).reshape(1, 3 * H)
    Whzr = jnp.concatenate([wzh, wrh], axis=1)                    # (H, 2H) fused z/r
    gx = jnp.stack([jnp.diag(params["Wgx"]), params["bgx"]], axis=0)  # (2, D)
    wgh = params["Wgh"].T                                         # (D, H)
    bgh = params["bgh"].reshape(1, H)
    av = (params["attn_v"] / math.sqrt(H)).reshape(1, H)          # fold 1/sqrt(H)

    # batch tiling: a "parallel" grid axis (megacore / v7x); block_b must be a
    # multiple of 8 (or the full batch).
    if block_b is None:
        block_b = 128 if B % 128 == 0 else B
    assert B % block_b == 0
    nb = B // block_b

    inputs = (P, XM, gx, wgh, bgh, Wx_all, Wm_all, b_all, Whzr, whh, av)
    in_specs = ([pl.BlockSpec((T, block_b, 4 * D), lambda b: (0, b, 0))]
                + _weight_specs(inputs[1:]))

    return pl.pallas_call(
        grud_encoder_kernel,
        out_shape=jax.ShapeDtypeStruct((B, H), jnp.float32),
        grid=(nb,),
        in_specs=in_specs,
        out_specs=pl.BlockSpec((block_b, H), lambda b: (b, 0)),
        scratch_shapes=[
            pltpu.VMEM((T * block_b, 3 * H), jnp.float32),   # gate pre-activations
            pltpu.VMEM((T * block_b, H), jnp.float32),       # hidden decay
        ],
        compiler_params=pltpu.CompilerParams(
            dimension_semantics=("parallel",),
            vmem_limit_bytes=32 * 1024 * 1024,
        ),
    )(*inputs)


# ----------------------------------------------------------------------------
# Pure-JAX reference (mirrors the module's math) for a sanity check
# ----------------------------------------------------------------------------
def _reference(params, x, t, mask):
    T, B, D = x.shape
    H = params["attn_v"].shape[0]
    X, XL, M, DL, XM = get_input_for_grud(t, x, mask)
    Wz, Wr, Wh = params["Wz"].T, params["Wr"].T, params["Wh"].T
    gxd, gxb = jnp.diag(params["Wgx"]), params["bgx"]
    wgh, bgh = params["Wgh"].T, params["bgh"]

    def step(h, inp):
        xx, xl, m, dl = inp
        delta_x = jnp.exp(-jnp.maximum(0.0, dl * gxd + gxb))
        delta_h = jnp.exp(-jnp.maximum(0.0, dl @ wgh + bgh))
        x_hat = m * xx + (1.0 - m) * (delta_x * xl + (1.0 - delta_x) * XM)
        hd = delta_h * h
        cat = jnp.concatenate([x_hat, hd, m], axis=1)
        z = jax.nn.sigmoid(cat @ Wz + params["bz"])
        r = jax.nn.sigmoid(cat @ Wr + params["br"])
        cat2 = jnp.concatenate([x_hat, r * hd, m], axis=1)
        h_t = jnp.tanh(cat2 @ Wh + params["bh"])
        h_new = (1.0 - z) * hd + z * h_t
        return h_new, h_new

    h0 = jnp.zeros((B, H), jnp.float32)
    _, hall = lax.scan(step, h0, (X, XL, M, DL))                  # (T, B, H)
    scores = (hall @ params["attn_v"]) / math.sqrt(H)             # (T, B)
    w = jax.nn.softmax(scores, axis=0)
    return jnp.sum(hall * w[:, :, None], axis=0)                  # (B, H)


if __name__ == "__main__":
    T, B, D, H = 8, 8, 4, 32

    key = jax.random.PRNGKey(0)
    kx, kt, km, kp = jax.random.split(key, 4)
    x = jax.random.normal(kx, (T, B, D), jnp.float32)
    t = jnp.cumsum(jax.random.uniform(kt, (T, B), jnp.float32, 0.5, 1.5), axis=0)
    mask = (jax.random.uniform(km, (T, B, D)) > 0.3).astype(jnp.float32)

    params = init_params(kp, D, H)

    C = jax.jit(grud_encoder_forward)(params, x, t, mask)
    C = jax.block_until_ready(C)

    assert C.shape == (B, H) and C.dtype == jnp.float32
    assert bool(jnp.all(jnp.isfinite(C)))

    C_ref = _reference(params, x, t, mask)
    assert bool(jnp.allclose(C, C_ref, rtol=2e-2, atol=2e-2))

    print("KERNEL_OK")
</pallas_src>

<mosaic_0001>
module attributes {stable_mosaic.version = 11 : i64} {
  func.func @grud_encoder_kernel(%arg0: i32, %arg1: memref<8x8x16xf32, #tpu.memory_space<vmem>>, %arg2: memref<1x4xf32, #tpu.memory_space<vmem>>, %arg3: memref<2x4xf32, #tpu.memory_space<vmem>>, %arg4: memref<4x32xf32, #tpu.memory_space<vmem>>, %arg5: memref<1x32xf32, #tpu.memory_space<vmem>>, %arg6: memref<4x96xf32, #tpu.memory_space<vmem>>, %arg7: memref<4x96xf32, #tpu.memory_space<vmem>>, %arg8: memref<1x96xf32, #tpu.memory_space<vmem>>, %arg9: memref<32x64xf32, #tpu.memory_space<vmem>>, %arg10: memref<32x32xf32, #tpu.memory_space<vmem>>, %arg11: memref<1x32xf32, #tpu.memory_space<vmem>>, %arg12: memref<8x32xf32, #tpu.memory_space<vmem>>, %arg13: memref<64x96xf32, #tpu.memory_space<vmem>>, %arg14: memref<64x32xf32, #tpu.memory_space<vmem>>) attributes {dimension_semantics = [#tpu.dimension_semantics<parallel>], iteration_bounds = array<i64: 1>, scalar_prefetch = 0 : i64, scratch_operands = 2 : i64, tpu.core_type = #tpu.core_type<tc>, window_params = [{transform_indices = @transform_0, window_bounds = array<i64: 8, 8, 16>}, {pipeline_mode = #tpu.pipeline_mode<synchronous>, transform_indices = @transform_1, window_bounds = array<i64: 1, 4>}, {pipeline_mode = #tpu.pipeline_mode<synchronous>, transform_indices = @transform_2, window_bounds = array<i64: 2, 4>}, {pipeline_mode = #tpu.pipeline_mode<synchronous>, transform_indices = @transform_3, window_bounds = array<i64: 4, 32>}, {pipeline_mode = #tpu.pipeline_mode<synchronous>, transform_indices = @transform_4, window_bounds = array<i64: 1, 32>}, {pipeline_mode = #tpu.pipeline_mode<synchronous>, transform_indices = @transform_5, window_bounds = array<i64: 4, 96>}, {pipeline_mode = #tpu.pipeline_mode<synchronous>, transform_indices = @transform_6, window_bounds = array<i64: 4, 96>}, {pipeline_mode = #tpu.pipeline_mode<synchronous>, transform_indices = @transform_7, window_bounds = array<i64: 1, 96>}, {pipeline_mode = #tpu.pipeline_mode<synchronous>, transform_indices = @transform_8, window_bounds = array<i64: 32, 64>}, {pipeline_mode = #tpu.pipeline_mode<synchronous>, transform_indices = @transform_9, window_bounds = array<i64: 32, 32>}, {pipeline_mode = #tpu.pipeline_mode<synchronous>, transform_indices = @transform_10, window_bounds = array<i64: 1, 32>}, {transform_indices = @transform_11, window_bounds = array<i64: 8, 32>}]} {
    %c0 = arith.constant 0 : index
    %c0_0 = arith.constant 0 : index
    %c0_1 = arith.constant 0 : index
    %0 = vector.load %arg1[%c0, %c0_0, %c0_1] : memref<8x8x16xf32, #tpu.memory_space<vmem>>, vector<8x8x16xf32>
    %1 = vector.shape_cast %0 : vector<8x8x16xf32> to vector<64x16xf32>
    %2 = vector.extract_strided_slice %1 {offsets = [0, 0], sizes = [64, 4], strides = [1, 1]} : vector<64x16xf32> to vector<64x4xf32>
    %3 = vector.extract_strided_slice %1 {offsets = [0, 4], sizes = [64, 4], strides = [1, 1]} : vector<64x16xf32> to vector<64x4xf32>
    %4 = vector.extract_strided_slice %1 {offsets = [0, 8], sizes = [64, 4], strides = [1, 1]} : vector<64x16xf32> to vector<64x4xf32>
    %5 = vector.extract_strided_slice %1 {offsets = [0, 12], sizes = [64, 4], strides = [1, 1]} : vector<64x16xf32> to vector<64x4xf32>
    %c0_2 = arith.constant 0 : index
    %c0_3 = arith.constant 0 : index
    %6 = vector.load %arg3[%c0_2, %c0_3] : memref<2x4xf32, #tpu.memory_space<vmem>>, vector<1x4xf32>
    %c1 = arith.constant 1 : index
    %c0_4 = arith.constant 0 : index
    %7 = vector.load %arg3[%c1, %c0_4] : memref<2x4xf32, #tpu.memory_space<vmem>>, vector<1x4xf32>
    %c0_5 = arith.constant 0 : index
    %c0_6 = arith.constant 0 : index
    %8 = vector.load %arg2[%c0_5, %c0_6] : memref<1x4xf32, #tpu.memory_space<vmem>>, vector<1x4xf32>
    %9 = vector.broadcast %6 : vector<1x4xf32> to vector<64x4xf32>
    %10 = arith.mulf %5, %9 : vector<64x4xf32>
    %11 = vector.broadcast %7 : vector<1x4xf32> to vector<64x4xf32>
    %12 = arith.addf %10, %11 : vector<64x4xf32>
    %cst = arith.constant 0.000000e+00 : f32
    %13 = vector.broadcast %cst : f32 to vector<64x4xf32>
    %14 = arith.maximumf %13, %12 : vector<64x4xf32>
    %cst_7 = arith.constant 0.000000e+00 : f32
    %15 = vector.broadcast %cst_7 : f32 to vector<64x4xf32>
    %16 = arith.subf %15, %14 : vector<64x4xf32>
    %17 = math.exp %16 : vector<64x4xf32>
    %18 = arith.mulf %4, %2 : vector<64x4xf32>
    %cst_8 = arith.constant 1.000000e+00 : f32
    %19 = vector.broadcast %cst_8 : f32 to vector<64x4xf32>
    %20 = arith.subf %19, %4 : vector<64x4xf32>
    %21 = arith.mulf %17, %3 : vector<64x4xf32>
    %cst_9 = arith.constant 1.000000e+00 : f32
    %22 = vector.broadcast %cst_9 : f32 to vector<64x4xf32>
    %23 = arith.subf %22, %17 : vector<64x4xf32>
    %24 = vector.broadcast %8 : vector<1x4xf32> to vector<64x4xf32>
    %25 = arith.mulf %23, %24 : vector<64x4xf32>
    %26 = arith.addf %21, %25 : vector<64x4xf32>
    %27 = arith.mulf %20, %26 : vector<64x4xf32>
    %28 = arith.addf %18, %27 : vector<64x4xf32>
    %c0_10 = arith.constant 0 : index
    %c0_11 = arith.constant 0 : index
    %29 = vector.load %arg6[%c0_10, %c0_11] : memref<4x96xf32, #tpu.memory_space<vmem>>, vector<4x96xf32>
    %cst_12 = arith.constant dense<0.000000e+00> : vector<64x96xf32>
    %30 = tpu.matmul %28, %29, %cst_12 {dimension_numbers = #tpu.dot_dimension_numbers<[1], [0], [0], [1], [0, 0, 1, 1], [], []>} : vector<64x4xf32>, vector<4x96xf32>, vector<64x96xf32> -> vector<64x96xf32>
    %c0_13 = arith.constant 0 : index
    %c0_14 = arith.constant 0 : index
    %31 = vector.load %arg7[%c0_13, %c0_14] : memref<4x96xf32, #tpu.memory_space<vmem>>, vector<4x96xf32>
    %cst_15 = arith.constant dense<0.000000e+00> : vector<64x96xf32>
    %32 = tpu.matmul %4, %31, %cst_15 {dimension_numbers = #tpu.dot_dimension_numbers<[1], [0], [0], [1], [0, 0, 1, 1], [], []>} : vector<64x4xf32>, vector<4x96xf32>, vector<64x96xf32> -> vector<64x96xf32>
    %33 = arith.addf %30, %32 : vector<64x96xf32>
    %c0_16 = arith.constant 0 : index
    %c0_17 = arith.constant 0 : index
    %34 = vector.load %arg8[%c0_16, %c0_17] : memref<1x96xf32, #tpu.memory_space<vmem>>, vector<1x96xf32>
    %35 = vector.broadcast %34 : vector<1x96xf32> to vector<64x96xf32>
    %36 = arith.addf %33, %35 : vector<64x96xf32>
    %c0_18 = arith.constant 0 : index
    %c0_19 = arith.constant 0 : index
    %37 = vector.load %arg13[%c0_18, %c0_19] : memref<64x96xf32, #tpu.memory_space<vmem>>, vector<64x96xf32>
    tpu.vector_store %arg13[%c0_18, %c0_19], %36 {strides = array<i32>} : memref<64x96xf32, #tpu.memory_space<vmem>>, vector<64x96xf32>,
    %c0_20 = arith.constant 0 : index
    %c0_21 = arith.constant 0 : index
    %38 = vector.load %arg4[%c0_20, %c0_21] : memref<4x32xf32, #tpu.memory_space<vmem>>, vector<4x32xf32>
    %cst_22 = arith.constant dense<0.000000e+00> : vector<64x32xf32>
    %39 = tpu.matmul %5, %38, %cst_22 {dimension_numbers = #tpu.dot_dimension_numbers<[1], [0], [0], [1], [0, 0, 1, 1], [], []>} : vector<64x4xf32>, vector<4x32xf32>, vector<64x32xf32> -> vector<64x32xf32>
    %c0_23 = arith.constant 0 : index
    %c0_24 = arith.constant 0 : index
    %40 = vector.load %arg5[%c0_23, %c0_24] : memref<1x32xf32, #tpu.memory_space<vmem>>, vector<1x32xf32>
    %41 = vector.broadcast %40 : vector<1x32xf32> to vector<64x32xf32>
    %42 = arith.addf %39, %41 : vector<64x32xf32>
    %cst_25 = arith.constant 0.000000e+00 : f32
    %43 = vector.broadcast %cst_25 : f32 to vector<64x32xf32>
    %44 = arith.maximumf %43, %42 : vector<64x32xf32>
    %cst_26 = arith.constant 0.000000e+00 : f32
    %45 = vector.broadcast %cst_26 : f32 to vector<64x32xf32>
    %46 = arith.subf %45, %44 : vector<64x32xf32>
    %47 = math.exp %46 : vector<64x32xf32>
    %c0_27 = arith.constant 0 : index
    %c0_28 = arith.constant 0 : index
    %48 = vector.load %arg14[%c0_27, %c0_28] : memref<64x32xf32, #tpu.memory_space<vmem>>, vector<64x32xf32>
    tpu.vector_store %arg14[%c0_27, %c0_28], %47 {strides = array<i32>} : memref<64x32xf32, #tpu.memory_space<vmem>>, vector<64x32xf32>,
    %c0_29 = arith.constant 0 : index
    %c0_30 = arith.constant 0 : index
    %49 = vector.load %arg9[%c0_29, %c0_30] : memref<32x64xf32, #tpu.memory_space<vmem>>, vector<32x64xf32>
    %c0_31 = arith.constant 0 : index
    %c0_32 = arith.constant 0 : index
    %50 = vector.load %arg10[%c0_31, %c0_32] : memref<32x32xf32, #tpu.memory_space<vmem>>, vector<32x32xf32>
    %c0_33 = arith.constant 0 : index
    %c0_34 = arith.constant 0 : index
    %51 = vector.load %arg11[%c0_33, %c0_34] : memref<1x32xf32, #tpu.memory_space<vmem>>, vector<1x32xf32>
    %cst_35 = arith.constant 0.000000e+00 : f32
    %52 = vector.broadcast %cst_35 : f32 to vector<8x32xf32>
    %cst_36 = arith.constant 0xFF800000 : f32
    %53 = vector.broadcast %cst_36 : f32 to vector<8x1xf32>
    %cst_37 = arith.constant 0.000000e+00 : f32
    %54 = vector.broadcast %cst_37 : f32 to vector<8x1xf32>
    %cst_38 = arith.constant 0.000000e+00 : f32
    %55 = vector.broadcast %cst_38 : f32 to vector<8x32xf32>
    %c0_i32 = arith.constant 0 : i32
    %c8_i32 = arith.constant 8 : i32
    %56 = arith.muli %c0_i32, %c8_i32 : i32
    %57 = tpu.assume_multiple %56, 8 : i32
    %58 = arith.index_cast %57 : i32 to index
    %c0_39 = arith.constant 0 : index
    %59 = vector.load %arg13[%58, %c0_39] : memref<64x96xf32, #tpu.memory_space<vmem>>, vector<8x96xf32>
    %60 = arith.index_cast %57 : i32 to index
    %c0_40 = arith.constant 0 : index
    %61 = vector.load %arg14[%60, %c0_40] : memref<64x32xf32, #tpu.memory_space<vmem>>, vector<8x32xf32>
    %62 = arith.mulf %61, %52 : vector<8x32xf32>
    %cst_41 = arith.constant dense<0.000000e+00> : vector<8x64xf32>
    %63 = tpu.matmul %62, %49, %cst_41 {dimension_numbers = #tpu.dot_dimension_numbers<[1], [0], [0], [1], [0, 0, 1, 1], [], []>} : vector<8x32xf32>, vector<32x64xf32>, vector<8x64xf32> -> vector<8x64xf32>
    %64 = vector.extract_strided_slice %59 {offsets = [0, 0], sizes = [8, 32], strides = [1, 1]} : vector<8x96xf32> to vector<8x32xf32>
    %65 = vector.extract_strided_slice %63 {offsets = [0, 0], sizes = [8, 32], strides = [1, 1]} : vector<8x64xf32> to vector<8x32xf32>
    %66 = arith.addf %64, %65 : vector<8x32xf32>
    %67 = arith.negf %66 : vector<8x32xf32>
    %68 = math.exp %67 : vector<8x32xf32>
    %cst_42 = arith.constant 1.000000e+00 : f32
    %69 = vector.broadcast %cst_42 : f32 to vector<8x32xf32>
    %70 = arith.addf %69, %68 : vector<8x32xf32>
    %71 = arith.divf %69, %70 : vector<8x32xf32>
    %72 = vector.extract_strided_slice %59 {offsets = [0, 32], sizes = [8, 32], strides = [1, 1]} : vector<8x96xf32> to vector<8x32xf32>
    %73 = vector.extract_strided_slice %63 {offsets = [0, 32], sizes = [8, 32], strides = [1, 1]} : vector<8x64xf32> to vector<8x32xf32>
    %74 = arith.addf %72, %73 : vector<8x32xf32>
    %75 = arith.negf %74 : vector<8x32xf32>
    %76 = math.exp %75 : vector<8x32xf32>
    %cst_43 = arith.constant 1.000000e+00 : f32
    %77 = vector.broadcast %cst_43 : f32 to vector<8x32xf32>
    %78 = arith.addf %77, %76 : vector<8x32xf32>
    %79 = arith.divf %77, %78 : vector<8x32xf32>
    %80 = vector.extract_strided_slice %59 {offsets = [0, 64], sizes = [8, 32], strides = [1, 1]} : vector<8x96xf32> to vector<8x32xf32>
    %81 = arith.mulf %79, %62 : vector<8x32xf32>
    %cst_44 = arith.constant dense<0.000000e+00> : vector<8x32xf32>
    %82 = tpu.matmul %81, %50, %cst_44 {dimension_numbers = #tpu.dot_dimension_numbers<[1], [0], [0], [1], [0, 0, 1, 1], [], []>} : vector<8x32xf32>, vector<32x32xf32>, vector<8x32xf32> -> vector<8x32xf32>
    %83 = arith.addf %80, %82 : vector<8x32xf32>
    %84 = math.tanh %83 : vector<8x32xf32>
    %cst_45 = arith.constant 1.000000e+00 : f32
    %85 = vector.broadcast %cst_45 : f32 to vector<8x32xf32>
    %86 = arith.subf %85, %71 : vector<8x32xf32>
    %87 = arith.mulf %86, %62 : vector<8x32xf32>
    %88 = arith.mulf %71, %84 : vector<8x32xf32>
    %89 = arith.addf %87, %88 : vector<8x32xf32>
    %90 = vector.broadcast %51 : vector<1x32xf32> to vector<8x32xf32>
    %91 = arith.mulf %89, %90 : vector<8x32xf32>
    %cst_46 = arith.constant dense<0.000000e+00> : vector<8xf32>
    %92 = vector.multi_reduction <add>, %91, %cst_46 [1] : vector<8x32xf32> to vector<8xf32>
    %93 = vector.shape_cast %92 : vector<8xf32> to vector<8x1xf32>
    %94 = arith.maximumf %53, %93 : vector<8x1xf32>
    %95 = arith.subf %53, %94 : vector<8x1xf32>
    %96 = math.exp %95 : vector<8x1xf32>
    %97 = arith.subf %93, %94 : vector<8x1xf32>
    %98 = math.exp %97 : vector<8x1xf32>
    %99 = arith.mulf %96, %54 : vector<8x1xf32>
    %100 = arith.addf %99, %98 : vector<8x1xf32>
    %101 = vector.broadcast %96 : vector<8x1xf32> to vector<8x32xf32>
    %102 = arith.mulf %101, %55 : vector<8x32xf32>
    %103 = vector.broadcast %98 : vector<8x1xf32> to vector<8x32xf32>
    %104 = arith.mulf %103, %89 : vector<8x32xf32>
    %105 = arith.addf %102, %104 : vector<8x32xf32>
    %c1_i32 = arith.constant 1 : i32
    %c8_i32_47 = arith.constant 8 : i32
    %106 = arith.muli %c1_i32, %c8_i32_47 : i32
    %107 = tpu.assume_multiple %106, 8 : i32
    %108 = arith.index_cast %107 : i32 to index
    %c0_48 = arith.constant 0 : index
    %109 = vector.load %arg13[%108, %c0_48] : memref<64x96xf32, #tpu.memory_space<vmem>>, vector<8x96xf32>
    %110 = arith.index_cast %107 : i32 to index
    %c0_49 = arith.constant 0 : index
    %111 = vector.load %arg14[%110, %c0_49] : memref<64x32xf32, #tpu.memory_space<vmem>>, vector<8x32xf32>
    %112 = arith.mulf %111, %89 : vector<8x32xf32>
    %cst_50 = arith.constant dense<0.000000e+00> : vector<8x64xf32>
    %113 = tpu.matmul %112, %49, %cst_50 {dimension_numbers = #tpu.dot_dimension_numbers<[1], [0], [0], [1], [0, 0, 1, 1], [], []>} : vector<8x32xf32>, vector<32x64xf32>, vector<8x64xf32> -> vector<8x64xf32>
    %114 = vector.extract_strided_slice %109 {offsets = [0, 0], sizes = [8, 32], strides = [1, 1]} : vector<8x96xf32> to vector<8x32xf32>
    %115 = vector.extract_strided_slice %113 {offsets = [0, 0], sizes = [8, 32], strides = [1, 1]} : vector<8x64xf32> to vector<8x32xf32>
    %116 = arith.addf %114, %115 : vector<8x32xf32>
    %117 = arith.negf %116 : vector<8x32xf32>
    %118 = math.exp %117 : vector<8x32xf32>
    %cst_51 = arith.constant 1.000000e+00 : f32
    %119 = vector.broadcast %cst_51 : f32 to vector<8x32xf32>
    %120 = arith.addf %119, %118 : vector<8x32xf32>
    %121 = arith.divf %119, %120 : vector<8x32xf32>
    %122 = vector.extract_strided_slice %109 {offsets = [0, 32], sizes = [8, 32], strides = [1, 1]} : vector<8x96xf32> to vector<8x32xf32>
    %123 = vector.extract_strided_slice %113 {offsets = [0, 32], sizes = [8, 32], strides = [1, 1]} : vector<8x64xf32> to vector<8x32xf32>
    %124 = arith.addf %122, %123 : vector<8x32xf32>
    %125 = arith.negf %124 : vector<8x32xf32>
    %126 = math.exp %125 : vector<8x32xf32>
    %cst_52 = arith.constant 1.000000e+00 : f32
    %127 = vector.broadcast %cst_52 : f32 to vector<8x32xf32>
    %128 = arith.addf %127, %126 : vector<8x32xf32>
    %129 = arith.divf %127, %128 : vector<8x32xf32>
    %130 = vector.extract_strided_slice %109 {offsets = [0, 64], sizes = [8, 32], strides = [1, 1]} : vector<8x96xf32> to vector<8x32xf32>
    %131 = arith.mulf %129, %112 : vector<8x32xf32>
    %cst_53 = arith.constant dense<0.000000e+00> : vector<8x32xf32>
    %132 = tpu.matmul %131, %50, %cst_53 {dimension_numbers = #tpu.dot_dimension_numbers<[1], [0], [0], [1], [0, 0, 1, 1], [], []>} : vector<8x32xf32>, vector<32x32xf32>, vector<8x32xf32> -> vector<8x32xf32>
    %133 = arith.addf %130, %132 : vector<8x32xf32>
    %134 = math.tanh %133 : vector<8x32xf32>
    %cst_54 = arith.constant 1.000000e+00 : f32
    %135 = vector.broadcast %cst_54 : f32 to vector<8x32xf32>
    %136 = arith.subf %135, %121 : vector<8x32xf32>
    %137 = arith.mulf %136, %112 : vector<8x32xf32>
    %138 = arith.mulf %121, %134 : vector<8x32xf32>
    %139 = arith.addf %137, %138 : vector<8x32xf32>
    %140 = vector.broadcast %51 : vector<1x32xf32> to vector<8x32xf32>
    %141 = arith.mulf %139, %140 : vector<8x32xf32>
    %cst_55 = arith.constant dense<0.000000e+00> : vector<8xf32>
    %142 = vector.multi_reduction <add>, %141, %cst_55 [1] : vector<8x32xf32> to vector<8xf32>
    %143 = vector.shape_cast %142 : vector<8xf32> to vector<8x1xf32>
    %144 = arith.maximumf %94, %143 : vector<8x1xf32>
    %145 = arith.subf %94, %144 : vector<8x1xf32>
    %146 = math.exp %145 : vector<8x1xf32>
    %147 = arith.subf %143, %144 : vector<8x1xf32>
    %148 = math.exp %147 : vector<8x1xf32>
    %149 = arith.mulf %146, %100 : vector<8x1xf32>
    %150 = arith.addf %149, %148 : vector<8x1xf32>
    %151 = vector.broadcast %146 : vector<8x1xf32> to vector<8x32xf32>
    %152 = arith.mulf %151, %105 : vector<8x32xf32>
    %153 = vector.broadcast %148 : vector<8x1xf32> to vector<8x32xf32>
    %154 = arith.mulf %153, %139 : vector<8x32xf32>
    %155 = arith.addf %152, %154 : vector<8x32xf32>
    %c2_i32 = arith.constant 2 : i32
    %c8_i32_56 = arith.constant 8 : i32
    %156 = arith.muli %c2_i32, %c8_i32_56 : i32
    %157 = tpu.assume_multiple %156, 8 : i32
    %158 = arith.index_cast %157 : i32 to index
    %c0_57 = arith.constant 0 : index
    %159 = vector.load %arg13[%158, %c0_57] : memref<64x96xf32, #tpu.memory_space<vmem>>, vector<8x96xf32>
    %160 = arith.index_cast %157 : i32 to index
    %c0_58 = arith.constant 0 : index
    %161 = vector.load %arg14[%160, %c0_58] : memref<64x32xf32, #tpu.memory_space<vmem>>, vector<8x32xf32>
    %162 = arith.mulf %161, %139 : vector<8x32xf32>
    %cst_59 = arith.constant dense<0.000000e+00> : vector<8x64xf32>
    %163 = tpu.matmul %162, %49, %cst_59 {dimension_numbers = #tpu.dot_dimension_numbers<[1], [0], [0], [1], [0, 0, 1, 1], [], []>} : vector<8x32xf32>, vector<32x64xf32>, vector<8x64xf32> -> vector<8x64xf32>
    %164 = vector.extract_strided_slice %159 {offsets = [0, 0], sizes = [8, 32], strides = [1, 1]} : vector<8x96xf32> to vector<8x32xf32>
    %165 = vector.extract_strided_slice %163 {offsets = [0, 0], sizes = [8, 32], strides = [1, 1]} : vector<8x64xf32> to vector<8x32xf32>
    %166 = arith.addf %164, %165 : vector<8x32xf32>
    %167 = arith.negf %166 : vector<8x32xf32>
    %168 = math.exp %167 : vector<8x32xf32>
    %cst_60 = arith.constant 1.000000e+00 : f32
    %169 = vector.broadcast %cst_60 : f32 to vector<8x32xf32>
    %170 = arith.addf %169, %168 : vector<8x32xf32>
    %171 = arith.divf %169, %170 : vector<8x32xf32>
    %172 = vector.extract_strided_slice %159 {offsets = [0, 32], sizes = [8, 32], strides = [1, 1]} : vector<8x96xf32> to vector<8x32xf32>
    %173 = vector.extract_strided_slice %163 {offsets = [0, 32], sizes = [8, 32], strides = [1, 1]} : vector<8x64xf32> to vector<8x32xf32>
    %174 = arith.addf %172, %173 : vector<8x32xf32>
    %175 = arith.negf %174 : vector<8x32xf32>
    %176 = math.exp %175 : vector<8x32xf32>
    %cst_61 = arith.constant 1.000000e+00 : f32
    %177 = vector.broadcast %cst_61 : f32 to vector<8x32xf32>
    %178 = arith.addf %177, %176 : vector<8x32xf32>
    %179 = arith.divf %177, %178 : vector<8x32xf32>
    %180 = vector.extract_strided_slice %159 {offsets = [0, 64], sizes = [8, 32], strides = [1, 1]} : vector<8x96xf32> to vector<8x32xf32>
    %181 = arith.mulf %179, %162 : vector<8x32xf32>
    %cst_62 = arith.constant dense<0.000000e+00> : vector<8x32xf32>
    %182 = tpu.matmul %181, %50, %cst_62 {dimension_numbers = #tpu.dot_dimension_numbers<[1], [0], [0], [1], [0, 0, 1, 1], [], []>} : vector<8x32xf32>, vector<32x32xf32>, vector<8x32xf32> -> vector<8x32xf32>
    %183 = arith.addf %180, %182 : vector<8x32xf32>
    %184 = math.tanh %183 : vector<8x32xf32>
    %cst_63 = arith.constant 1.000000e+00 : f32
    %185 = vector.broadcast %cst_63 : f32 to vector<8x32xf32>
    %186 = arith.subf %185, %171 : vector<8x32xf32>
    %187 = arith.mulf %186, %162 : vector<8x32xf32>
    %188 = arith.mulf %171, %184 : vector<8x32xf32>
    %189 = arith.addf %187, %188 : vector<8x32xf32>
    %190 = vector.broadcast %51 : vector<1x32xf32> to vector<8x32xf32>
    %191 = arith.mulf %189, %190 : vector<8x32xf32>
    %cst_64 = arith.constant dense<0.000000e+00> : vector<8xf32>
    %192 = vector.multi_reduction <add>, %191, %cst_64 [1] : vector<8x32xf32> to vector<8xf32>
    %193 = vector.shape_cast %192 : vector<8xf32> to vector<8x1xf32>
    %194 = arith.maximumf %144, %193 : vector<8x1xf32>
    %195 = arith.subf %144, %194 : vector<8x1xf32>
    %196 = math.exp %195 : vector<8x1xf32>
    %197 = arith.subf %193, %194 : vector<8x1xf32>
    %198 = math.exp %197 : vector<8x1xf32>
    %199 = arith.mulf %196, %150 : vector<8x1xf32>
    %200 = arith.addf %199, %198 : vector<8x1xf32>
    %201 = vector.broadcast %196 : vector<8x1xf32> to vector<8x32xf32>
    %202 = arith.mulf %201, %155 : vector<8x32xf32>
    %203 = vector.broadcast %198 : vector<8x1xf32> to vector<8x32xf32>
    %204 = arith.mulf %203, %189 : vector<8x32xf32>
    %205 = arith.addf %202, %204 : vector<8x32xf32>
    %c3_i32 = arith.constant 3 : i32
    %c8_i32_65 = arith.constant 8 : i32
    %206 = arith.muli %c3_i32, %c8_i32_65 : i32
    %207 = tpu.assume_multiple %206, 8 : i32
    %208 = arith.index_cast %207 : i32 to index
    %c0_66 = arith.constant 0 : index
    %209 = vector.load %arg13[%208, %c0_66] : memref<64x96xf32, #tpu.memory_space<vmem>>, vector<8x96xf32>
    %210 = arith.index_cast %207 : i32 to index
    %c0_67 = arith.constant 0 : index
    %211 = vector.load %arg14[%210, %c0_67] : memref<64x32xf32, #tpu.memory_space<vmem>>, vector<8x32xf32>
    %212 = arith.mulf %211, %189 : vector<8x32xf32>
    %cst_68 = arith.constant dense<0.000000e+00> : vector<8x64xf32>
    %213 = tpu.matmul %212, %49, %cst_68 {dimension_numbers = #tpu.dot_dimension_numbers<[1], [0], [0], [1], [0, 0, 1, 1], [], []>} : vector<8x32xf32>, vector<32x64xf32>, vector<8x64xf32> -> vector<8x64xf32>
    %214 = vector.extract_strided_slice %209 {offsets = [0, 0], sizes = [8, 32], strides = [1, 1]} : vector<8x96xf32> to vector<8x32xf32>
    %215 = vector.extract_strided_slice %213 {offsets = [0, 0], sizes = [8, 32], strides = [1, 1]} : vector<8x64xf32> to vector<8x32xf32>
    %216 = arith.addf %214, %215 : vector<8x32xf32>
    %217 = arith.negf %216 : vector<8x32xf32>
    %218 = math.exp %217 : vector<8x32xf32>
    %cst_69 = arith.constant 1.000000e+00 : f32
    %219 = vector.broadcast %cst_69 : f32 to vector<8x32xf32>
    %220 = arith.addf %219, %218 : vector<8x32xf32>
    %221 = arith.divf %219, %220 : vector<8x32xf32>
    %222 = vector.extract_strided_slice %209 {offsets = [0, 32], sizes = [8, 32], strides = [1, 1]} : vector<8x96xf32> to vector<8x32xf32>
    %223 = vector.extract_strided_slice %213 {offsets = [0, 32], sizes = [8, 32], strides = [1, 1]} : vector<8x64xf32> to vector<8x32xf32>
    %224 = arith.addf %222, %223 : vector<8x32xf32>
    %225 = arith.negf %224 : vector<8x32xf32>
    %226 = math.exp %225 : vector<8x32xf32>
    %cst_70 = arith.constant 1.000000e+00 : f32
    %227 = vector.broadcast %cst_70 : f32 to vector<8x32xf32>
    %228 = arith.addf %227, %226 : vector<8x32xf32>
    %229 = arith.divf %227, %228 : vector<8x32xf32>
    %230 = vector.extract_strided_slice %209 {offsets = [0, 64], sizes = [8, 32], strides = [1, 1]} : vector<8x96xf32> to vector<8x32xf32>
    %231 = arith.mulf %229, %212 : vector<8x32xf32>
    %cst_71 = arith.constant dense<0.000000e+00> : vector<8x32xf32>
    %232 = tpu.matmul %231, %50, %cst_71 {dimension_numbers = #tpu.dot_dimension_numbers<[1], [0], [0], [1], [0, 0, 1, 1], [], []>} : vector<8x32xf32>, vector<32x32xf32>, vector<8x32xf32> -> vector<8x32xf32>
    %233 = arith.addf %230, %232 : vector<8x32xf32>
    %234 = math.tanh %233 : vector<8x32xf32>
    %cst_72 = arith.constant 1.000000e+00 : f32
    %235 = vector.broadcast %cst_72 : f32 to vector<8x32xf32>
    %236 = arith.subf %235, %221 : vector<8x32xf32>
    %237 = arith.mulf %236, %212 : vector<8x32xf32>
    %238 = arith.mulf %221, %234 : vector<8x32xf32>
    %239 = arith.addf %237, %238 : vector<8x32xf32>
    %240 = vector.broadcast %51 : vector<1x32xf32> to vector<8x32xf32>
    %241 = arith.mulf %239, %240 : vector<8x32xf32>
    %cst_73 = arith.constant dense<0.000000e+00> : vector<8xf32>
    %242 = vector.multi_reduction <add>, %241, %cst_73 [1] : vector<8x32xf32> to vector<8xf32>
    %243 = vector.shape_cast %242 : vector<8xf32> to vector<8x1xf32>
    %244 = arith.maximumf %194, %243 : vector<8x1xf32>
    %245 = arith.subf %194, %244 : vector<8x1xf32>
    %246 = math.exp %245 : vector<8x1xf32>
    %247 = arith.subf %243, %244 : vector<8x1xf32>
    %248 = math.exp %247 : vector<8x1xf32>
    %249 = arith.mulf %246, %200 : vector<8x1xf32>
    %250 = arith.addf %249, %248 : vector<8x1xf32>
    %251 = vector.broadcast %246 : vector<8x1xf32> to vector<8x32xf32>
    %252 = arith.mulf %251, %205 : vector<8x32xf32>
    %253 = vector.broadcast %248 : vector<8x1xf32> to vector<8x32xf32>
    %254 = arith.mulf %253, %239 : vector<8x32xf32>
    %255 = arith.addf %252, %254 : vector<8x32xf32>
    %c4_i32 = arith.constant 4 : i32
    %c8_i32_74 = arith.constant 8 : i32
    %256 = arith.muli %c4_i32, %c8_i32_74 : i32
    %257 = tpu.assume_multiple %256, 8 : i32
    %258 = arith.index_cast %257 : i32 to index
    %c0_75 = arith.constant 0 : index
    %259 = vector.load %arg13[%258, %c0_75] : memref<64x96xf32, #tpu.memory_space<vmem>>, vector<8x96xf32>
    %260 = arith.index_cast %257 : i32 to index
    %c0_76 = arith.constant 0 : index
    %261 = vector.load %arg14[%260, %c0_76] : memref<64x32xf32, #tpu.memory_space<vmem>>, vector<8x32xf32>
    %262 = arith.mulf %261, %239 : vector<8x32xf32>
    %cst_77 = arith.constant dense<0.000000e+00> : vector<8x64xf32>
    %263 = tpu.matmul %262, %49, %cst_77 {dimension_numbers = #tpu.dot_dimension_numbers<[1], [0], [0], [1], [0, 0, 1, 1], [], []>} : vector<8x32xf32>, vector<32x64xf32>, vector<8x64xf32> -> vector<8x64xf32>
    %264 = vector.extract_strided_slice %259 {offsets = [0, 0], sizes = [8, 32], strides = [1, 1]} : vector<8x96xf32> to vector<8x32xf32>
    %265 = vector.extract_strided_slice %263 {offsets = [0, 0], sizes = [8, 32], strides = [1, 1]} : vector<8x64xf32> to vector<8x32xf32>
    %266 = arith.addf %264, %265 : vector<8x32xf32>
    %267 = arith.negf %266 : vector<8x32xf32>
    %268 = math.exp %267 : vector<8x32xf32>
    %cst_78 = arith.constant 1.000000e+00 : f32
    %269 = vector.broadcast %cst_78 : f32 to vector<8x32xf32>
    %270 = arith.addf %269, %268 : vector<8x32xf32>
    %271 = arith.divf %269, %270 : vector<8x32xf32>
    %272 = vector.extract_strided_slice %259 {offsets = [0, 32], sizes = [8, 32], strides = [1, 1]} : vector<8x96xf32> to vector<8x32xf32>
    %273 = vector.extract_strided_slice %263 {offsets = [0, 32], sizes = [8, 32], strides = [1, 1]} : vector<8x64xf32> to vector<8x32xf32>
    %274 = arith.addf %272, %273 : vector<8x32xf32>
    %275 = arith.negf %274 : vector<8x32xf32>
    %276 = math.exp %275 : vector<8x32xf32>
    %cst_79 = arith.constant 1.000000e+00 : f32
    %277 = vector.broadcast %cst_79 : f32 to vector<8x32xf32>
    %278 = arith.addf %277, %276 : vector<8x32xf32>
    %279 = arith.divf %277, %278 : vector<8x32xf32>
    %280 = vector.extract_strided_slice %259 {offsets = [0, 64], sizes = [8, 32], strides = [1, 1]} : vector<8x96xf32> to vector<8x32xf32>
    %281 = arith.mulf %279, %262 : vector<8x32xf32>
    %cst_80 = arith.constant dense<0.000000e+00> : vector<8x32xf32>
    %282 = tpu.matmul %281, %50, %cst_80 {dimension_numbers = #tpu.dot_dimension_numbers<[1], [0], [0], [1], [0, 0, 1, 1], [], []>} : vector<8x32xf32>, vector<32x32xf32>, vector<8x32xf32> -> vector<8x32xf32>
    %283 = arith.addf %280, %282 : vector<8x32xf32>
    %284 = math.tanh %283 : vector<8x32xf32>
    %cst_81 = arith.constant 1.000000e+00 : f32
    %285 = vector.broadcast %cst_81 : f32 to vector<8x32xf32>
    %286 = arith.subf %285, %271 : vector<8x32xf32>
    %287 = arith.mulf %286, %262 : vector<8x32xf32>
    %288 = arith.mulf %271, %284 : vector<8x32xf32>
    %289 = arith.addf %287, %288 : vector<8x32xf32>
    %290 = vector.broadcast %51 : vector<1x32xf32> to vector<8x32xf32>
    %291 = arith.mulf %289, %290 : vector<8x32xf32>
    %cst_82 = arith.constant dense<0.000000e+00> : vector<8xf32>
    %292 = vector.multi_reduction <add>, %291, %cst_82 [1] : vector<8x32xf32> to vector<8xf32>
    %293 = vector.shape_cast %292 : vector<8xf32> to vector<8x1xf32>
    %294 = arith.maximumf %244, %293 : vector<8x1xf32>
    %295 = arith.subf %244, %294 : vector<8x1xf32>
    %296 = math.exp %295 : vector<8x1xf32>
    %297 = arith.subf %293, %294 : vector<8x1xf32>
    %298 = math.exp %297 : vector<8x1xf32>
    %299 = arith.mulf %296, %250 : vector<8x1xf32>
    %300 = arith.addf %299, %298 : vector<8x1xf32>
    %301 = vector.broadcast %296 : vector<8x1xf32> to vector<8x32xf32>
    %302 = arith.mulf %301, %255 : vector<8x32xf32>
    %303 = vector.broadcast %298 : vector<8x1xf32> to vector<8x32xf32>
    %304 = arith.mulf %303, %289 : vector<8x32xf32>
    %305 = arith.addf %302, %304 : vector<8x32xf32>
    %c5_i32 = arith.constant 5 : i32
    %c8_i32_83 = arith.constant 8 : i32
    %306 = arith.muli %c5_i32, %c8_i32_83 : i32
    %307 = tpu.assume_multiple %306, 8 : i32
    %308 = arith.index_cast %307 : i32 to index
    %c0_84 = arith.constant 0 : index
    %309 = vector.load %arg13[%308, %c0_84] : memref<64x96xf32, #tpu.memory_space<vmem>>, vector<8x96xf32>
    %310 = arith.index_cast %307 : i32 to index
    %c0_85 = arith.constant 0 : index
    %311 = vector.load %arg14[%310, %c0_85] : memref<64x32xf32, #tpu.memory_space<vmem>>, vector<8x32xf32>
    %312 = arith.mulf %311, %289 : vector<8x32xf32>
    %cst_86 = arith.constant dense<0.000000e+00> : vector<8x64xf32>
    %313 = tpu.matmul %312, %49, %cst_86 {dimension_numbers = #tpu.dot_dimension_numbers<[1], [0], [0], [1], [0, 0, 1, 1], [], []>} : vector<8x32xf32>, vector<32x64xf32>, vector<8x64xf32> -> vector<8x64xf32>
    %314 = vector.extract_strided_slice %309 {offsets = [0, 0], sizes = [8, 32], strides = [1, 1]} : vector<8x96xf32> to vector<8x32xf32>
    %315 = vector.extract_strided_slice %313 {offsets = [0, 0], sizes = [8, 32], strides = [1, 1]} : vector<8x64xf32> to vector<8x32xf32>
    %316 = arith.addf %314, %315 : vector<8x32xf32>
    %317 = arith.negf %316 : vector<8x32xf32>
    %318 = math.exp %317 : vector<8x32xf32>
    %cst_87 = arith.constant 1.000000e+00 : f32
    %319 = vector.broadcast %cst_87 : f32 to vector<8x32xf32>
    %320 = arith.addf %319, %318 : vector<8x32xf32>
    %321 = arith.divf %319, %320 : vector<8x32xf32>
    %322 = vector.extract_strided_slice %309 {offsets = [0, 32], sizes = [8, 32], strides = [1, 1]} : vector<8x96xf32> to vector<8x32xf32>
    %323 = vector.extract_strided_slice %313 {offsets = [0, 32], sizes = [8, 32], strides = [1, 1]} : vector<8x64xf32> to vector<8x32xf32>
    %324 = arith.addf %322, %323 : vector<8x32xf32>
    %325 = arith.negf %324 : vector<8x32xf32>
    %326 = math.exp %325 : vector<8x32xf32>
    %cst_88 = arith.constant 1.000000e+00 : f32
    %327 = vector.broadcast %cst_88 : f32 to vector<8x32xf32>
    %328 = arith.addf %327, %326 : vector<8x32xf32>
    %329 = arith.divf %327, %328 : vector<8x32xf32>
    %330 = vector.extract_strided_slice %309 {offsets = [0, 64], sizes = [8, 32], strides = [1, 1]} : vector<8x96xf32> to vector<8x32xf32>
    %331 = arith.mulf %329, %312 : vector<8x32xf32>
    %cst_89 = arith.constant dense<0.000000e+00> : vector<8x32xf32>
    %332 = tpu.matmul %331, %50, %cst_89 {dimension_numbers = #tpu.dot_dimension_numbers<[1], [0], [0], [1], [0, 0, 1, 1], [], []>} : vector<8x32xf32>, vector<32x32xf32>, vector<8x32xf32> -> vector<8x32xf32>
    %333 = arith.addf %330, %332 : vector<8x32xf32>
    %334 = math.tanh %333 : vector<8x32xf32>
    %cst_90 = arith.constant 1.000000e+00 : f32
    %335 = vector.broadcast %cst_90 : f32 to vector<8x32xf32>
    %336 = arith.subf %335, %321 : vector<8x32xf32>
    %337 = arith.mulf %336, %312 : vector<8x32xf32>
    %338 = arith.mulf %321, %334 : vector<8x32xf32>
    %339 = arith.addf %337, %338 : vector<8x32xf32>
    %340 = vector.broadcast %51 : vector<1x32xf32> to vector<8x32xf32>
    %341 = arith.mulf %339, %340 : vector<8x32xf32>
    %cst_91 = arith.constant dense<0.000000e+00> : vector<8xf32>
    %342 = vector.multi_reduction <add>, %341, %cst_91 [1] : vector<8x32xf32> to vector<8xf32>
    %343 = vector.shape_cast %342 : vector<8xf32> to vector<8x1xf32>
    %344 = arith.maximumf %294, %343 : vector<8x1xf32>
    %345 = arith.subf %294, %344 : vector<8x1xf32>
    %346 = math.exp %345 : vector<8x1xf32>
    %347 = arith.subf %343, %344 : vector<8x1xf32>
    %348 = math.exp %347 : vector<8x1xf32>
    %349 = arith.mulf %346, %300 : vector<8x1xf32>
    %350 = arith.addf %349, %348 : vector<8x1xf32>
    %351 = vector.broadcast %346 : vector<8x1xf32> to vector<8x32xf32>
    %352 = arith.mulf %351, %305 : vector<8x32xf32>
    %353 = vector.broadcast %348 : vector<8x1xf32> to vector<8x32xf32>
    %354 = arith.mulf %353, %339 : vector<8x32xf32>
    %355 = arith.addf %352, %354 : vector<8x32xf32>
    %c6_i32 = arith.constant 6 : i32
    %c8_i32_92 = arith.constant 8 : i32
    %356 = arith.muli %c6_i32, %c8_i32_92 : i32
    %357 = tpu.assume_multiple %356, 8 : i32
    %358 = arith.index_cast %357 : i32 to index
    %c0_93 = arith.constant 0 : index
    %359 = vector.load %arg13[%358, %c0_93] : memref<64x96xf32, #tpu.memory_space<vmem>>, vector<8x96xf32>
    %360 = arith.index_cast %357 : i32 to index
    %c0_94 = arith.constant 0 : index
    %361 = vector.load %arg14[%360, %c0_94] : memref<64x32xf32, #tpu.memory_space<vmem>>, vector<8x32xf32>
    %362 = arith.mulf %361, %339 : vector<8x32xf32>
    %cst_95 = arith.constant dense<0.000000e+00> : vector<8x64xf32>
    %363 = tpu.matmul %362, %49, %cst_95 {dimension_numbers = #tpu.dot_dimension_numbers<[1], [0], [0], [1], [0, 0, 1, 1], [], []>} : vector<8x32xf32>, vector<32x64xf32>, vector<8x64xf32> -> vector<8x64xf32>
    %364 = vector.extract_strided_slice %359 {offsets = [0, 0], sizes = [8, 32], strides = [1, 1]} : vector<8x96xf32> to vector<8x32xf32>
    %365 = vector.extract_strided_slice %363 {offsets = [0, 0], sizes = [8, 32], strides = [1, 1]} : vector<8x64xf32> to vector<8x32xf32>
    %366 = arith.addf %364, %365 : vector<8x32xf32>
    %367 = arith.negf %366 : vector<8x32xf32>
    %368 = math.exp %367 : vector<8x32xf32>
    %cst_96 = arith.constant 1.000000e+00 : f32
    %369 = vector.broadcast %cst_96 : f32 to vector<8x32xf32>
    %370 = arith.addf %369, %368 : vector<8x32xf32>
    %371 = arith.divf %369, %370 : vector<8x32xf32>
    %372 = vector.extract_strided_slice %359 {offsets = [0, 32], sizes = [8, 32], strides = [1, 1]} : vector<8x96xf32> to vector<8x32xf32>
    %373 = vector.extract_strided_slice %363 {offsets = [0, 32], sizes = [8, 32], strides = [1, 1]} : vector<8x64xf32> to vector<8x32xf32>
    %374 = arith.addf %372, %373 : vector<8x32xf32>
    %375 = arith.negf %374 : vector<8x32xf32>
    %376 = math.exp %375 : vector<8x32xf32>
    %cst_97 = arith.constant 1.000000e+00 : f32
    %377 = vector.broadcast %cst_97 : f32 to vector<8x32xf32>
    %378 = arith.addf %377, %376 : vector<8x32xf32>
    %379 = arith.divf %377, %378 : vector<8x32xf32>
    %380 = vector.extract_strided_slice %359 {offsets = [0, 64], sizes = [8, 32], strides = [1, 1]} : vector<8x96xf32> to vector<8x32xf32>
    %381 = arith.mulf %379, %362 : vector<8x32xf32>
    %cst_98 = arith.constant dense<0.000000e+00> : vector<8x32xf32>
    %382 = tpu.matmul %381, %50, %cst_98 {dimension_numbers = #tpu.dot_dimension_numbers<[1], [0], [0], [1], [0, 0, 1, 1], [], []>} : vector<8x32xf32>, vector<32x32xf32>, vector<8x32xf32> -> vector<8x32xf32>
    %383 = arith.addf %380, %382 : vector<8x32xf32>
    %384 = math.tanh %383 : vector<8x32xf32>
    %cst_99 = arith.constant 1.000000e+00 : f32
    %385 = vector.broadcast %cst_99 : f32 to vector<8x32xf32>
    %386 = arith.subf %385, %371 : vector<8x32xf32>
    %387 = arith.mulf %386, %362 : vector<8x32xf32>
    %388 = arith.mulf %371, %384 : vector<8x32xf32>
    %389 = arith.addf %387, %388 : vector<8x32xf32>
    %390 = vector.broadcast %51 : vector<1x32xf32> to vector<8x32xf32>
    %391 = arith.mulf %389, %390 : vector<8x32xf32>
    %cst_100 = arith.constant dense<0.000000e+00> : vector<8xf32>
    %392 = vector.multi_reduction <add>, %391, %cst_100 [1] : vector<8x32xf32> to vector<8xf32>
    %393 = vector.shape_cast %392 : vector<8xf32> to vector<8x1xf32>
    %394 = arith.maximumf %344, %393 : vector<8x1xf32>
    %395 = arith.subf %344, %394 : vector<8x1xf32>
    %396 = math.exp %395 : vector<8x1xf32>
    %397 = arith.subf %393, %394 : vector<8x1xf32>
    %398 = math.exp %397 : vector<8x1xf32>
    %399 = arith.mulf %396, %350 : vector<8x1xf32>
    %400 = arith.addf %399, %398 : vector<8x1xf32>
    %401 = vector.broadcast %396 : vector<8x1xf32> to vector<8x32xf32>
    %402 = arith.mulf %401, %355 : vector<8x32xf32>
    %403 = vector.broadcast %398 : vector<8x1xf32> to vector<8x32xf32>
    %404 = arith.mulf %403, %389 : vector<8x32xf32>
    %405 = arith.addf %402, %404 : vector<8x32xf32>
    %c7_i32 = arith.constant 7 : i32
    %c8_i32_101 = arith.constant 8 : i32
    %406 = arith.muli %c7_i32, %c8_i32_101 : i32
    %407 = tpu.assume_multiple %406, 8 : i32
    %408 = arith.index_cast %407 : i32 to index
    %c0_102 = arith.constant 0 : index
    %409 = vector.load %arg13[%408, %c0_102] : memref<64x96xf32, #tpu.memory_space<vmem>>, vector<8x96xf32>
    %410 = arith.index_cast %407 : i32 to index
    %c0_103 = arith.constant 0 : index
    %411 = vector.load %arg14[%410, %c0_103] : memref<64x32xf32, #tpu.memory_space<vmem>>, vector<8x32xf32>
    %412 = arith.mulf %411, %389 : vector<8x32xf32>
    %cst_104 = arith.constant dense<0.000000e+00> : vector<8x64xf32>
    %413 = tpu.matmul %412, %49, %cst_104 {dimension_numbers = #tpu.dot_dimension_numbers<[1], [0], [0], [1], [0, 0, 1, 1], [], []>} : vector<8x32xf32>, vector<32x64xf32>, vector<8x64xf32> -> vector<8x64xf32>
    %414 = vector.extract_strided_slice %409 {offsets = [0, 0], sizes = [8, 32], strides = [1, 1]} : vector<8x96xf32> to vector<8x32xf32>
    %415 = vector.extract_strided_slice %413 {offsets = [0, 0], sizes = [8, 32], strides = [1, 1]} : vector<8x64xf32> to vector<8x32xf32>
    %416 = arith.addf %414, %415 : vector<8x32xf32>
    %417 = arith.negf %416 : vector<8x32xf32>
    %418 = math.exp %417 : vector<8x32xf32>
    %cst_105 = arith.constant 1.000000e+00 : f32
    %419 = vector.broadcast %cst_105 : f32 to vector<8x32xf32>
    %420 = arith.addf %419, %418 : vector<8x32xf32>
    %421 = arith.divf %419, %420 : vector<8x32xf32>
    %422 = vector.extract_strided_slice %409 {offsets = [0, 32], sizes = [8, 32], strides = [1, 1]} : vector<8x96xf32> to vector<8x32xf32>
    %423 = vector.extract_strided_slice %413 {offsets = [0, 32], sizes = [8, 32], strides = [1, 1]} : vector<8x64xf32> to vector<8x32xf32>
    %424 = arith.addf %422, %423 : vector<8x32xf32>
    %425 = arith.negf %424 : vector<8x32xf32>
    %426 = math.exp %425 : vector<8x32xf32>
    %cst_106 = arith.constant 1.000000e+00 : f32
    %427 = vector.broadcast %cst_106 : f32 to vector<8x32xf32>
    %428 = arith.addf %427, %426 : vector<8x32xf32>
    %429 = arith.divf %427, %428 : vector<8x32xf32>
    %430 = vector.extract_strided_slice %409 {offsets = [0, 64], sizes = [8, 32], strides = [1, 1]} : vector<8x96xf32> to vector<8x32xf32>
    %431 = arith.mulf %429, %412 : vector<8x32xf32>
    %cst_107 = arith.constant dense<0.000000e+00> : vector<8x32xf32>
    %432 = tpu.matmul %431, %50, %cst_107 {dimension_numbers = #tpu.dot_dimension_numbers<[1], [0], [0], [1], [0, 0, 1, 1], [], []>} : vector<8x32xf32>, vector<32x32xf32>, vector<8x32xf32> -> vector<8x32xf32>
    %433 = arith.addf %430, %432 : vector<8x32xf32>
    %434 = math.tanh %433 : vector<8x32xf32>
    %cst_108 = arith.constant 1.000000e+00 : f32
    %435 = vector.broadcast %cst_108 : f32 to vector<8x32xf32>
    %436 = arith.subf %435, %421 : vector<8x32xf32>
    %437 = arith.mulf %436, %412 : vector<8x32xf32>
    %438 = arith.mulf %421, %434 : vector<8x32xf32>
    %439 = arith.addf %437, %438 : vector<8x32xf32>
    %440 = vector.broadcast %51 : vector<1x32xf32> to vector<8x32xf32>
    %441 = arith.mulf %439, %440 : vector<8x32xf32>
    %cst_109 = arith.constant dense<0.000000e+00> : vector<8xf32>
    %442 = vector.multi_reduction <add>, %441, %cst_109 [1] : vector<8x32xf32> to vector<8xf32>
    %443 = vector.shape_cast %442 : vector<8xf32> to vector<8x1xf32>
    %444 = arith.maximumf %394, %443 : vector<8x1xf32>
    %445 = arith.subf %394, %444 : vector<8x1xf32>
    %446 = math.exp %445 : vector<8x1xf32>
    %447 = arith.subf %443, %444 : vector<8x1xf32>
    %448 = math.exp %447 : vector<8x1xf32>
    %449 = arith.mulf %446, %400 : vector<8x1xf32>
    %450 = arith.addf %449, %448 : vector<8x1xf32>
    %451 = vector.broadcast %446 : vector<8x1xf32> to vector<8x32xf32>
    %452 = arith.mulf %451, %405 : vector<8x32xf32>
    %453 = vector.broadcast %448 : vector<8x1xf32> to vector<8x32xf32>
    %454 = arith.mulf %453, %439 : vector<8x32xf32>
    %455 = arith.addf %452, %454 : vector<8x32xf32>
    %c8_i32_110 = arith.constant 8 : i32
    %456 = tpu.reciprocal %450 {approx = true} : vector<8x1xf32> -> vector<8x1xf32>
    %457 = vector.broadcast %456 : vector<8x1xf32> to vector<8x32xf32>
    %458 = arith.mulf %455, %457 : vector<8x32xf32>
    %c0_111 = arith.constant 0 : index
    %c0_112 = arith.constant 0 : index
    %459 = vector.load %arg12[%c0_111, %c0_112] : memref<8x32xf32, #tpu.memory_space<vmem>>, vector<8x32xf32>
    tpu.vector_store %arg12[%c0_111, %c0_112], %458 {strides = array<i32>} : memref<8x32xf32, #tpu.memory_space<vmem>>, vector<8x32xf32>,
    return
  }
  func.func @transform_0(%arg0: i32) -> (i32, i32, i32) {
    %c0_i32 = arith.constant 0 : i32
    %c0_i32_0 = arith.constant 0 : i32
    %c0_i32_1 = arith.constant 0 : i32
    return %c0_i32, %arg0, %c0_i32_0 : i32, i32, i32
  }
  func.func @transform_1(%arg0: i32) -> (i32, i32) {
    %c0_i32 = arith.constant 0 : i32
    %c0_i32_0 = arith.constant 0 : i32
    %c0_i32_1 = arith.constant 0 : i32
    return %c0_i32, %c0_i32_0 : i32, i32
  }
  func.func @transform_2(%arg0: i32) -> (i32, i32) {
    %c0_i32 = arith.constant 0 : i32
    %c0_i32_0 = arith.constant 0 : i32
    %c0_i32_1 = arith.constant 0 : i32
    return %c0_i32, %c0_i32_0 : i32, i32
  }
  func.func @transform_3(%arg0: i32) -> (i32, i32) {
    %c0_i32 = arith.constant 0 : i32
    %c0_i32_0 = arith.constant 0 : i32
    %c0_i32_1 = arith.constant 0 : i32
    return %c0_i32, %c0_i32_0 : i32, i32
  }
  func.func @transform_4(%arg0: i32) -> (i32, i32) {
    %c0_i32 = arith.constant 0 : i32
    %c0_i32_0 = arith.constant 0 : i32
    %c0_i32_1 = arith.constant 0 : i32
    return %c0_i32, %c0_i32_0 : i32, i32
  }
  func.func @transform_5(%arg0: i32) -> (i32, i32) {
    %c0_i32 = arith.constant 0 : i32
    %c0_i32_0 = arith.constant 0 : i32
    %c0_i32_1 = arith.constant 0 : i32
    return %c0_i32, %c0_i32_0 : i32, i32
  }
  func.func @transform_6(%arg0: i32) -> (i32, i32) {
    %c0_i32 = arith.constant 0 : i32
    %c0_i32_0 = arith.constant 0 : i32
    %c0_i32_1 = arith.constant 0 : i32
    return %c0_i32, %c0_i32_0 : i32, i32
  }
  func.func @transform_7(%arg0: i32) -> (i32, i32) {
    %c0_i32 = arith.constant 0 : i32
    %c0_i32_0 = arith.constant 0 : i32
    %c0_i32_1 = arith.constant 0 : i32
    return %c0_i32, %c0_i32_0 : i32, i32
  }
  func.func @transform_8(%arg0: i32) -> (i32, i32) {
    %c0_i32 = arith.constant 0 : i32
    %c0_i32_0 = arith.constant 0 : i32
    %c0_i32_1 = arith.constant 0 : i32
    return %c0_i32, %c0_i32_0 : i32, i32
  }
  func.func @transform_9(%arg0: i32) -> (i32, i32) {
    %c0_i32 = arith.constant 0 : i32
    %c0_i32_0 = arith.constant 0 : i32
    %c0_i32_1 = arith.constant 0 : i32
    return %c0_i32, %c0_i32_0 : i32, i32
  }
  func.func @transform_10(%arg0: i32) -> (i32, i32) {
    %c0_i32 = arith.constant 0 : i32
    %c0_i32_0 = arith.constant 0 : i32
    %c0_i32_1 = arith.constant 0 : i32
    return %c0_i32, %c0_i32_0 : i32, i32
  }
  func.func @transform_11(%arg0: i32) -> (i32, i32) {
    %c0_i32 = arith.constant 0 : i32
    %c0_i32_0 = arith.constant 0 : i32
    return %arg0, %c0_i32 : i32, i32
  }
}

</mosaic_0001>

<llo_original>
// kernel: custom-call.3
$region0: #{custom-call.3}
  %s0 = inlined_call_operand.vmem [shape: f32[7,8,4], index: 0, kind: output, shape index: {}]

// kernel: custom-call.2
$region0: #{custom-call.2}
  %s0 = inlined_call_operand.vmem [shape: f32[8,4], index: 0, kind: output, shape index: {}]

// kernel: grud_encoder_forward.1
$region0: #{grud_encoder_forward.1}
  #allocation0 [shape = 'u32[]', space=smem, size = 0x4, offset = 0x4, fixed_abs, tag = 'smem constant byte address 0x4 - core index']
  #allocation1 [shape = 'u32[72,128]{1,0:T(1,128)}', space=vmem, size = 0x9000, scoped, tag = 'internal scratch']
  #allocation2 [shape = 'f32[64,96]{1,0:T(8,128)}', space=vmem, size = 0x8000, scoped, tag = 'scratch operand']
  #allocation3 [shape = 'f32[64,32]{1,0:T(8,128)}', space=vmem, size = 0x8000, scoped, tag = 'scratch operand']
  %s0 = inlined_call_operand.vmem [shape: f32[8,8,16], index: 0, kind: input, shape index: {}]
  %s1 = inlined_call_operand.vmem [shape: f32[1,4], index: 1, kind: input, shape index: {}]
  %s2 = inlined_call_operand.vmem [shape: f32[2,4], index: 2, kind: input, shape index: {}]
  %s3 = inlined_call_operand.vmem [shape: f32[4,32], index: 3, kind: input, shape index: {}]
  %s4 = inlined_call_operand.vmem [shape: f32[1,32], index: 4, kind: input, shape index: {}]
  %s5 = inlined_call_operand.vmem [shape: f32[4,96], index: 5, kind: input, shape index: {}]
  %s6 = inlined_call_operand.vmem [shape: f32[4,96], index: 6, kind: input, shape index: {}]
  %s7 = inlined_call_operand.vmem [shape: f32[1,96], index: 7, kind: input, shape index: {}]
  %s8 = inlined_call_operand.vmem [shape: f32[32,64], index: 8, kind: input, shape index: {}]
  %s9 = inlined_call_operand.vmem [shape: f32[32,32], index: 9, kind: input, shape index: {}]
  %s10 = inlined_call_operand.vmem [shape: f32[1,32], index: 10, kind: input, shape index: {}]
  %s11 = inlined_call_operand.hbm [shape: f32[8,32], index: 11, kind: output, shape index: {}]
  %s12 = sld [smem:[#allocation0]]
  $region54: #{grud_encoder_forward.1} parent=0
    _
  %s14 = ssub.s32 1, %s12
  %s15 = scalar_select 0, %s14, %s12
  $region1: #{grud_encoder_forward.1} parent=0
    #allocation4 [shape = 'u8[4096]{0}', space=vmem, size = 0x1000, scoped, tag = 'output window, operand 0, single buffered']
    #allocation5 [shape = 's32[1]{0}', space=sflag, size = 0x4, scoped, tag = 'scoped memory for grud_encoder_forward.1']
    %16 = vsyncpa [#allocation5], 0
    // Predicated region
    $region2: #{grud_encoder_forward.1} parent=1 // pred_check
      _
    $region3: #{grud_encoder_forward.1} parent=1 // pred_check_branch
      %18 = sbr.rel (0) target = $region5
    $region4: #{grud_encoder_forward.1} parent=1 // pred_region
      _
    $region5: #{grud_encoder_forward.1} parent=1 // pred_fallthru
      _
    // Predicated region
    $region6: #{grud_encoder_forward.1} parent=1 // pred_check
      _
    $region7: #{grud_encoder_forward.1} parent=1 // pred_check_branch
      %20 = sbr.rel (0) target = $region9
    $region8: #{grud_encoder_forward.1} parent=1 // pred_region
      _
    $region9: #{grud_encoder_forward.1} parent=1 // pred_fallthru
      _
    // Predicated region
    $region10: #{grud_encoder_forward.1} parent=1 // pred_check
      _
    $region11: #{grud_encoder_forward.1} parent=1 // pred_check_branch
      %22 = sbr.rel (0) target = $region13
    $region12: #{grud_encoder_forward.1} parent=1 // pred_region
      _
    $region13: #{grud_encoder_forward.1} parent=1 // pred_fallthru
      _
    // Predicated region
    $region14: #{grud_encoder_forward.1} parent=1 // pred_check
      _
    $region15: #{grud_encoder_forward.1} parent=1 // pred_check_branch
      %24 = sbr.rel (0) target = $region17
    $region16: #{grud_encoder_forward.1} parent=1 // pred_region
      _
    $region17: #{grud_encoder_forward.1} parent=1 // pred_fallthru
      _
    // Predicated region
    $region18: #{grud_encoder_forward.1} parent=1 // pred_check
      _
    $region19: #{grud_encoder_forward.1} parent=1 // pred_check_branch
      %26 = sbr.rel (0) target = $region21
    $region20: #{grud_encoder_forward.1} parent=1 // pred_region
      _
    $region21: #{grud_encoder_forward.1} parent=1 // pred_fallthru
      _
    // Predicated region
    $region22: #{grud_encoder_forward.1} parent=1 // pred_check
      _
    $region23: #{grud_encoder_forward.1} parent=1 // pred_check_branch
      %28 = sbr.rel (0) target = $region25
    $region24: #{grud_encoder_forward.1} parent=1 // pred_region
      _
    $region25: #{grud_encoder_forward.1} parent=1 // pred_fallthru
      _
    // Predicated region
    $region26: #{grud_encoder_forward.1} parent=1 // pred_check
      _
    $region27: #{grud_encoder_forward.1} parent=1 // pred_check_branch
      %30 = sbr.rel (0) target = $region29
    $region28: #{grud_encoder_forward.1} parent=1 // pred_region
      _
    $region29: #{grud_encoder_forward.1} parent=1 // pred_fallthru
      _
    // Predicated region
    $region30: #{grud_encoder_forward.1} parent=1 // pred_check
      _
    $region31: #{grud_encoder_forward.1} parent=1 // pred_check_branch
      %32 = sbr.rel (0) target = $region33
    $region32: #{grud_encoder_forward.1} parent=1 // pred_region
      _
    $region33: #{grud_encoder_forward.1} parent=1 // pred_fallthru
      _
    // Predicated region
    $region34: #{grud_encoder_forward.1} parent=1 // pred_check
      _
    $region35: #{grud_encoder_forward.1} parent=1 // pred_check_branch
      %34 = sbr.rel (0) target = $region37
    $region36: #{grud_encoder_forward.1} parent=1 // pred_region
      _
    $region37: #{grud_encoder_forward.1} parent=1 // pred_fallthru
      _
    // Predicated region
    $region38: #{grud_encoder_forward.1} parent=1 // pred_check
      _
    $region39: #{grud_encoder_forward.1} parent=1 // pred_check_branch
      %36 = sbr.rel (0) target = $region41
    $region40: #{grud_encoder_forward.1} parent=1 // pred_region
      _
    $region41: #{grud_encoder_forward.1} parent=1 // pred_fallthru
      _
    // Predicated region
    $region42: #{grud_encoder_forward.1} parent=1 // pred_check
      _
    $region43: #{grud_encoder_forward.1} parent=1 // pred_check_branch
      %38 = sbr.rel (0) target = $region45
    $region44: #{grud_encoder_forward.1} parent=1 // pred_region
      _
    $region45: #{grud_encoder_forward.1} parent=1 // pred_fallthru
      _
    %v39 = vld [vmem:[%s0] sm:$0xff]
    %v40 = vld [vmem:[%s0 + $0x8] sm:$0xff]
    %v41 = vld [vmem:[%s0 + $0x10] sm:$0xff]
    %v42 = vld [vmem:[%s0 + $0x18] sm:$0xff]
    %v43 = vld [vmem:[%s0 + $0x20] sm:$0xff]
    %v44 = vld [vmem:[%s0 + $0x28] sm:$0xff]
    %v45 = vld [vmem:[%s0 + $0x30] sm:$0xff]
    %v46 = vld [vmem:[%s0 + $0x38] sm:$0xff]
    %v47 = vld [vmem:[%s2] sm:$0x1]
    %v48 = vld [vmem:[%s2 + $0x1] sm:$0x1]
    %v49 = vld [vmem:[%s1] sm:$0x1]
    %v50 = vperm.slane %v47, 0
    %52 = vrot.lane.b32.xlu0 %v50, 12
    %v53 = vpop.permute.xlu0 %52
    %v55 = vmul.f32 %v39, %v53
    %v56 = vmul.f32 %v40, %v53
    %v57 = vmul.f32 %v41, %v53
    %v58 = vmul.f32 %v42, %v53
    %v59 = vmul.f32 %v43, %v53
    %v60 = vmul.f32 %v44, %v53
    %v61 = vmul.f32 %v45, %v53
    %v62 = vmul.f32 %v46, %v53
    %v63 = vperm.slane %v48, 0
    %65 = vrot.lane.b32.xlu0 %v63, 12
    %v66 = vpop.permute.xlu0 %65
    %v68 = vadd.f32 %v55, %v66
    %v69 = vadd.f32 %v56, %v66
    %v70 = vadd.f32 %v57, %v66
    %v71 = vadd.f32 %v58, %v66
    %v72 = vadd.f32 %v59, %v66
    %v73 = vadd.f32 %v60, %v66
    %v74 = vadd.f32 %v61, %v66
    %v75 = vadd.f32 %v62, %v66
    %v76 = vmax.f32 %v68, 0.0
    %v77 = vmax.f32 %v69, 0.0
    %v78 = vmax.f32 %v70, 0.0
    %v79 = vmax.f32 %v71, 0.0
    %v80 = vmax.f32 %v72, 0.0
    %v81 = vmax.f32 %v73, 0.0
    %v82 = vmax.f32 %v74, 0.0
    %v83 = vmax.f32 %v75, 0.0
    %v84 = vsub.f32 0.0, %v76
    %v85 = vsub.f32 0.0, %v77
    %v86 = vsub.f32 0.0, %v78
    %v87 = vsub.f32 0.0, %v79
    %v88 = vsub.f32 0.0, %v80
    %v89 = vsub.f32 0.0, %v81
    %v90 = vsub.f32 0.0, %v82
    %v91 = vsub.f32 0.0, %v83
    %v92 = vmul.f32 %v84, 1.442695
    %v93 = vpow.pop %v92
    %v94 = vmul.f32 %v85, 1.442695
    %v95 = vpow.pop %v94
    %v96 = vmul.f32 %v86, 1.442695
    %v97 = vpow.pop %v96
    %v98 = vmul.f32 %v87, 1.442695
    %v99 = vpow.pop %v98
    %v100 = vmul.f32 %v88, 1.442695
    %v101 = vpow.pop %v100
    %v102 = vmul.f32 %v89, 1.442695
    %v103 = vpow.pop %v102
    %v104 = vmul.f32 %v90, 1.442695
    %v105 = vpow.pop %v104
    %v106 = vmul.f32 %v91, 1.442695
    %v107 = vpow.pop %v106
    %116 = vrot.lane.b32.xlu0 %v39, 8
    %v117 = vpop.permute.xlu0 %116
    %118 = vrot.lane.b32.xlu0 %v40, 8
    %v119 = vpop.permute.xlu0 %118
    %120 = vrot.lane.b32.xlu0 %v41, 8
    %v121 = vpop.permute.xlu0 %120
    %122 = vrot.lane.b32.xlu0 %v42, 8
    %v123 = vpop.permute.xlu0 %122
    %124 = vrot.lane.b32.xlu0 %v43, 8
    %v125 = vpop.permute.xlu0 %124
    %126 = vrot.lane.b32.xlu0 %v44, 8
    %v127 = vpop.permute.xlu0 %126
    %128 = vrot.lane.b32.xlu0 %v45, 8
    %v129 = vpop.permute.xlu0 %128
    %130 = vrot.lane.b32.xlu0 %v46, 8
    %v131 = vpop.permute.xlu0 %130
    %v140 = vmul.f32 %v39, %v117
    %v141 = vmul.f32 %v40, %v119
    %v142 = vmul.f32 %v41, %v121
    %v143 = vmul.f32 %v42, %v123
    %v144 = vmul.f32 %v43, %v125
    %v145 = vmul.f32 %v44, %v127
    %v146 = vmul.f32 %v45, %v129
    %v147 = vmul.f32 %v46, %v131
    %v148 = vsub.f32 1.0, %v39
    %v149 = vsub.f32 1.0, %v40
    %v150 = vsub.f32 1.0, %v41
    %v151 = vsub.f32 1.0, %v42
    %v152 = vsub.f32 1.0, %v43
    %v153 = vsub.f32 1.0, %v44
    %v154 = vsub.f32 1.0, %v45
    %v155 = vsub.f32 1.0, %v46
    %v156 = vmul.f32 %v93, %v117
    %v157 = vmul.f32 %v95, %v119
    %v158 = vmul.f32 %v97, %v121
    %v159 = vmul.f32 %v99, %v123
    %v160 = vmul.f32 %v101, %v125
    %v161 = vmul.f32 %v103, %v127
    %v162 = vmul.f32 %v105, %v129
    %v163 = vmul.f32 %v107, %v131
    %v164 = vsub.f32 1.0, %v93
    %v165 = vsub.f32 1.0, %v95
    %v166 = vsub.f32 1.0, %v97
    %v167 = vsub.f32 1.0, %v99
    %v168 = vsub.f32 1.0, %v101
    %v169 = vsub.f32 1.0, %v103
    %v170 = vsub.f32 1.0, %v105
    %v171 = vsub.f32 1.0, %v107
    %v173 = vperm.slane %v49, 0
    %174 = vrot.lane.b32.xlu0 %v173, 12
    %v175 = vpop.permute.xlu0 %174
    %v177 = vmul.f32 %v164, %v175
    %v178 = vmul.f32 %v165, %v175
    %v179 = vmul.f32 %v166, %v175
    %v180 = vmul.f32 %v167, %v175
    %v181 = vmul.f32 %v168, %v175
    %v182 = vmul.f32 %v169, %v175
    %v183 = vmul.f32 %v170, %v175
    %v184 = vmul.f32 %v171, %v175
    %v185 = vadd.f32 %v156, %v177
    %v186 = vadd.f32 %v157, %v178
    %v187 = vadd.f32 %v158, %v179
    %v188 = vadd.f32 %v159, %v180
    %v189 = vadd.f32 %v160, %v181
    %v190 = vadd.f32 %v161, %v182
    %v191 = vadd.f32 %v162, %v183
    %v192 = vadd.f32 %v163, %v184
    %201 = vrot.lane.b32.xlu0 %v185, 124
    %v202 = vpop.permute.xlu0 %201
    %203 = vrot.lane.b32.xlu0 %v186, 124
    %v204 = vpop.permute.xlu0 %203
    %205 = vrot.lane.b32.xlu0 %v187, 124
    %v206 = vpop.permute.xlu0 %205
    %207 = vrot.lane.b32.xlu0 %v188, 124
    %v208 = vpop.permute.xlu0 %207
    %209 = vrot.lane.b32.xlu0 %v189, 124
    %v210 = vpop.permute.xlu0 %209
    %211 = vrot.lane.b32.xlu0 %v190, 124
    %v212 = vpop.permute.xlu0 %211
    %213 = vrot.lane.b32.xlu0 %v191, 124
    %v214 = vpop.permute.xlu0 %213
    %215 = vrot.lane.b32.xlu0 %v192, 124
    %v216 = vpop.permute.xlu0 %215
    %v225 = vmul.f32 %v148, %v202
    %v226 = vmul.f32 %v149, %v204
    %v227 = vmul.f32 %v150, %v206
    %v228 = vmul.f32 %v151, %v208
    %v229 = vmul.f32 %v152, %v210
    %v230 = vmul.f32 %v153, %v212
    %v231 = vmul.f32 %v154, %v214
    %v232 = vmul.f32 %v155, %v216
    %v233 = vadd.f32 %v140, %v225
    %v234 = vadd.f32 %v141, %v226
    %v235 = vadd.f32 %v142, %v227
    %v236 = vadd.f32 %v143, %v228
    %v237 = vadd.f32 %v144, %v229
    %v238 = vadd.f32 %v145, %v230
    %v239 = vadd.f32 %v146, %v231
    %v240 = vadd.f32 %v147, %v232
    %v241 = vld [vmem:[%s5] sm:$0xf]
    %v242 = vld [vmem:[%s6] sm:$0xf]
    %243 = vrot.lane.b32.xlu0 %v39, 120
    %v244 = vpop.permute.xlu0 %243
    %245 = vrot.lane.b32.xlu0 %v40, 120
    %v246 = vpop.permute.xlu0 %245
    %247 = vrot.lane.b32.xlu0 %v41, 120
    %v248 = vpop.permute.xlu0 %247
    %249 = vrot.lane.b32.xlu0 %v42, 120
    %v250 = vpop.permute.xlu0 %249
    %251 = vrot.lane.b32.xlu0 %v43, 120
    %v252 = vpop.permute.xlu0 %251
    %253 = vrot.lane.b32.xlu0 %v44, 120
    %v254 = vpop.permute.xlu0 %253
    %255 = vrot.lane.b32.xlu0 %v45, 120
    %v256 = vpop.permute.xlu0 %255
    %257 = vrot.lane.b32.xlu0 %v46, 120
    %v258 = vpop.permute.xlu0 %257
    %vm259 = vcmask 31744
    %v260 = vsel %vm259, %v244, 0
    %v262 = vsel %vm259, %v246, 0
    %v264 = vsel %vm259, %v248, 0
    %v266 = vsel %vm259, %v250, 0
    %v268 = vsel %vm259, %v252, 0
    %v270 = vsel %vm259, %v254, 0
    %v272 = vsel %vm259, %v256, 0
    %v274 = vsel %vm259, %v258, 0
    %vm276 = vcmask 1043456
    %v278 = vsel %vm276, %v242, 0
    %280 = vmatpush.msra.mxu0 0.0
    %281 = vmatpush.msra.mxu0 0.0
    %282 = vmatpush.msra.mxu0 0.0
    %283 = vmatpush.msra.mxu0 0.0
    %284 = vmatpush.msra.mxu0 0.0
    %285 = vmatpush.msra.mxu0 0.0
    %286 = vmatpush.msra.mxu0 0.0
    %287 = vmatpush.msra.mxu0 0.0
    %288 = vmatpush.msra.mxu0 0.0
    %289 = vmatpush.msra.mxu0 0.0
    %290 = vmatpush.msra.mxu0 0.0
    %291 = vmatpush.msra.mxu0 0.0
    %292 = vmatpush.msra.mxu0 0.0
    %293 = vmatpush.msra.mxu0 0.0
    %294 = vmatpush.msra.mxu0 0.0
    %295 = vmatpush.msra.mxu0 %v278
    %296 = vmatmul.f32.gmra.mxu0 %v260
    %v297 = vpop.f32.mrf.mxu0
    %v298 = vadd.f32 0.0, %v297
    %299 = vmatmul.f32.gmra.mxu0 %v262
    %v300 = vpop.f32.mrf.mxu0
    %v301 = vadd.f32 0.0, %v300
    %302 = vmatmul.f32.gmra.mxu0 %v264
    %v303 = vpop.f32.mrf.mxu0
    %v304 = vadd.f32 0.0, %v303
    %305 = vmatmul.f32.gmra.mxu0 %v266
    %v306 = vpop.f32.mrf.mxu0
    %v307 = vadd.f32 0.0, %v306
    %308 = vmatmul.f32.gmra.mxu0 %v268
    %v309 = vpop.f32.mrf.mxu0
    %v310 = vadd.f32 0.0, %v309
    %311 = vmatmul.f32.gmra.mxu0 %v270
    %v312 = vpop.f32.mrf.mxu0
    %v313 = vadd.f32 0.0, %v312
    %314 = vmatmul.f32.gmra.mxu0 %v272
    %v315 = vpop.f32.mrf.mxu0
    %v316 = vadd.f32 0.0, %v315
    %317 = vmatmul.f32.gmra.mxu0 %v274
    %v318 = vpop.f32.mrf.mxu0
    %v319 = vadd.f32 0.0, %v318
    %320 = vdwg.mxu0
    %329 = vrot.lane.b32.xlu0 %v233, 120
    %v330 = vpop.permute.xlu0 %329
    %331 = vrot.lane.b32.xlu0 %v234, 120
    %v332 = vpop.permute.xlu0 %331
    %333 = vrot.lane.b32.xlu0 %v235, 120
    %v334 = vpop.permute.xlu0 %333
    %335 = vrot.lane.b32.xlu0 %v236, 120
    %v336 = vpop.permute.xlu0 %335
    %337 = vrot.lane.b32.xlu0 %v237, 120
    %v338 = vpop.permute.xlu0 %337
    %339 = vrot.lane.b32.xlu0 %v238, 120
    %v340 = vpop.permute.xlu0 %339
    %341 = vrot.lane.b32.xlu0 %v239, 120
    %v342 = vpop.permute.xlu0 %341
    %343 = vrot.lane.b32.xlu0 %v240, 120
    %v344 = vpop.permute.xlu0 %343
    %v345 = vsel %vm259, %v330, 0
    %v347 = vsel %vm259, %v332, 0
    %v349 = vsel %vm259, %v334, 0
    %v351 = vsel %vm259, %v336, 0
    %v353 = vsel %vm259, %v338, 0
    %v355 = vsel %vm259, %v340, 0
    %v357 = vsel %vm259, %v342, 0
    %v359 = vsel %vm259, %v344, 0
    %v362 = vsel %vm276, %v241, 0
    %364 = vmatpush.msra.mxu0 0.0
    %365 = vmatpush.msra.mxu0 0.0
    %366 = vmatpush.msra.mxu0 0.0
    %367 = vmatpush.msra.mxu0 0.0
    %368 = vmatpush.msra.mxu0 0.0
    %369 = vmatpush.msra.mxu0 0.0
    %370 = vmatpush.msra.mxu0 0.0
    %371 = vmatpush.msra.mxu0 0.0
    %372 = vmatpush.msra.mxu0 0.0
    %373 = vmatpush.msra.mxu0 0.0
    %374 = vmatpush.msra.mxu0 0.0
    %375 = vmatpush.msra.mxu0 0.0
    %376 = vmatpush.msra.mxu0 0.0
    %377 = vmatpush.msra.mxu0 0.0
    %378 = vmatpush.msra.mxu0 0.0
    %379 = vmatpush.msra.mxu0 %v362
    %380 = vmatmul.f32.gmra.mxu0 %v345
    %v381 = vpop.f32.mrf.mxu0
    %v382 = vadd.f32 %v298, %v381
    %383 = vmatmul.f32.gmra.mxu0 %v347
    %v384 = vpop.f32.mrf.mxu0
    %v385 = vadd.f32 %v301, %v384
    %386 = vmatmul.f32.gmra.mxu0 %v349
    %v387 = vpop.f32.mrf.mxu0
    %v388 = vadd.f32 %v304, %v387
    %389 = vmatmul.f32.gmra.mxu0 %v351
    %v390 = vpop.f32.mrf.mxu0
    %v391 = vadd.f32 %v307, %v390
    %392 = vmatmul.f32.gmra.mxu0 %v353
    %v393 = vpop.f32.mrf.mxu0
    %v394 = vadd.f32 %v310, %v393
    %395 = vmatmul.f32.gmra.mxu0 %v355
    %v396 = vpop.f32.mrf.mxu0
    %v397 = vadd.f32 %v313, %v396
    %398 = vmatmul.f32.gmra.mxu0 %v357
    %v399 = vpop.f32.mrf.mxu0
    %v400 = vadd.f32 %v316, %v399
    %401 = vmatmul.f32.gmra.mxu0 %v359
    %v402 = vpop.f32.mrf.mxu0
    %v403 = vadd.f32 %v319, %v402
    %404 = vdwg.mxu0
    %v405 = vld [vmem:[%s7] sm:$0x1]
    %v407 = vperm.slane %v405, 0
    %v409 = vadd.f32 %v382, %v407
    %v410 = vadd.f32 %v385, %v407
    %v411 = vadd.f32 %v388, %v407
    %v412 = vadd.f32 %v391, %v407
    %v413 = vadd.f32 %v394, %v407
    %v414 = vadd.f32 %v397, %v407
    %v415 = vadd.f32 %v400, %v407
    %v416 = vadd.f32 %v403, %v407
    %vm417 = vcmask 785408
    %418 = vst.msk [vmem:[#allocation2] sm:$0xff] %vm417, %v409
    %419 = vst.msk [vmem:[#allocation2 + $0x8] sm:$0xff] %vm417, %v410
    %420 = vst.msk [vmem:[#allocation2 + $0x10] sm:$0xff] %vm417, %v411
    %421 = vst.msk [vmem:[#allocation2 + $0x18] sm:$0xff] %vm417, %v412
    %422 = vst.msk [vmem:[#allocation2 + $0x20] sm:$0xff] %vm417, %v413
    %423 = vst.msk [vmem:[#allocation2 + $0x28] sm:$0xff] %vm417, %v414
    %424 = vst.msk [vmem:[#allocation2 + $0x30] sm:$0xff] %vm417, %v415
    %425 = vst.msk [vmem:[#allocation2 + $0x38] sm:$0xff] %vm417, %v416
    %v426 = vld [vmem:[%s3] sm:$0xf]
    %v427 = vld [vmem:[%s4] sm:$0x1]
    %v429 = vperm.slane %v427, 0
    %431 = vrot.lane.b32.xlu0 %v39, 116
    %v432 = vpop.permute.xlu0 %431
    %433 = vrot.lane.b32.xlu0 %v40, 116
    %v434 = vpop.permute.xlu0 %433
    %435 = vrot.lane.b32.xlu0 %v41, 116
    %v436 = vpop.permute.xlu0 %435
    %437 = vrot.lane.b32.xlu0 %v42, 116
    %v438 = vpop.permute.xlu0 %437
    %439 = vrot.lane.b32.xlu0 %v43, 116
    %v440 = vpop.permute.xlu0 %439
    %441 = vrot.lane.b32.xlu0 %v44, 116
    %v442 = vpop.permute.xlu0 %441
    %443 = vrot.lane.b32.xlu0 %v45, 116
    %v444 = vpop.permute.xlu0 %443
    %445 = vrot.lane.b32.xlu0 %v46, 116
    %v446 = vpop.permute.xlu0 %445
    %v447 = vsel %vm259, %v432, 0
    %v449 = vsel %vm259, %v434, 0
    %v451 = vsel %vm259, %v436, 0
    %v453 = vsel %vm259, %v438, 0
    %v455 = vsel %vm259, %v440, 0
    %v457 = vsel %vm259, %v442, 0
    %v459 = vsel %vm259, %v444, 0
    %v461 = vsel %vm259, %v446, 0
    %v464 = vsel %vm276, %v426, 0
    %466 = vmatpush.msra.mxu0 0.0
    %467 = vmatpush.msra.mxu0 0.0
    %468 = vmatpush.msra.mxu0 0.0
    %469 = vmatpush.msra.mxu0 0.0
    %470 = vmatpush.msra.mxu0 0.0
    %471 = vmatpush.msra.mxu0 0.0
    %472 = vmatpush.msra.mxu0 0.0
    %473 = vmatpush.msra.mxu0 0.0
    %474 = vmatpush.msra.mxu0 0.0
    %475 = vmatpush.msra.mxu0 0.0
    %476 = vmatpush.msra.mxu0 0.0
    %477 = vmatpush.msra.mxu0 0.0
    %478 = vmatpush.msra.mxu0 0.0
    %479 = vmatpush.msra.mxu0 0.0
    %480 = vmatpush.msra.mxu0 0.0
    %481 = vmatpush.msra.mxu0 %v464
    %482 = vmatmul.f32.gmra.mxu0 %v447
    %v483 = vpop.f32.mrf.mxu0
    %v484 = vadd.f32 %v429, %v483
    %485 = vmatmul.f32.gmra.mxu0 %v449
    %v486 = vpop.f32.mrf.mxu0
    %v487 = vadd.f32 %v429, %v486
    %488 = vmatmul.f32.gmra.mxu0 %v451
    %v489 = vpop.f32.mrf.mxu0
    %v490 = vadd.f32 %v429, %v489
    %491 = vmatmul.f32.gmra.mxu0 %v453
    %v492 = vpop.f32.mrf.mxu0
    %v493 = vadd.f32 %v429, %v492
    %494 = vmatmul.f32.gmra.mxu0 %v455
    %v495 = vpop.f32.mrf.mxu0
    %v496 = vadd.f32 %v429, %v495
    %497 = vmatmul.f32.gmra.mxu0 %v457
    %v498 = vpop.f32.mrf.mxu0
    %v499 = vadd.f32 %v429, %v498
    %500 = vmatmul.f32.gmra.mxu0 %v459
    %v501 = vpop.f32.mrf.mxu0
    %v502 = vadd.f32 %v429, %v501
    %503 = vmatmul.f32.gmra.mxu0 %v461
    %v504 = vpop.f32.mrf.mxu0
    %v505 = vadd.f32 %v429, %v504
    %506 = vdwg.mxu0
    %v507 = vmax.f32 %v484, 0.0
    %v508 = vmax.f32 %v487, 0.0
    %v509 = vmax.f32 %v490, 0.0
    %v510 = vmax.f32 %v493, 0.0
    %v511 = vmax.f32 %v496, 0.0
    %v512 = vmax.f32 %v499, 0.0
    %v513 = vmax.f32 %v502, 0.0
    %v514 = vmax.f32 %v505, 0.0
    %v515 = vsub.f32 0.0, %v507
    %v516 = vsub.f32 0.0, %v508
    %v517 = vsub.f32 0.0, %v509
    %v518 = vsub.f32 0.0, %v510
    %v519 = vsub.f32 0.0, %v511
    %v520 = vsub.f32 0.0, %v512
    %v521 = vsub.f32 0.0, %v513
    %v522 = vsub.f32 0.0, %v514
    %v523 = vmul.f32 %v515, 1.442695
    %v524 = vpow.pop %v523
    %v525 = vmul.f32 %v516, 1.442695
    %v526 = vpow.pop %v525
    %v527 = vmul.f32 %v517, 1.442695
    %v528 = vpow.pop %v527
    %v529 = vmul.f32 %v518, 1.442695
    %v530 = vpow.pop %v529
    %v531 = vmul.f32 %v519, 1.442695
    %v532 = vpow.pop %v531
    %v533 = vmul.f32 %v520, 1.442695
    %v534 = vpow.pop %v533
    %v535 = vmul.f32 %v521, 1.442695
    %v536 = vpow.pop %v535
    %v537 = vmul.f32 %v522, 1.442695
    %v538 = vpow.pop %v537
    %vm539 = vcmask 261120
    %540 = vst.msk [vmem:[#allocation3] sm:$0xff] %vm539, %v524
    %541 = vst.msk [vmem:[#allocation3 + $0x8] sm:$0xff] %vm539, %v526
    %542 = vst.msk [vmem:[#allocation3 + $0x10] sm:$0xff] %vm539, %v528
    %543 = vst.msk [vmem:[#allocation3 + $0x18] sm:$0xff] %vm539, %v530
    %544 = vst.msk [vmem:[#allocation3 + $0x20] sm:$0xff] %vm539, %v532
    %545 = vst.msk [vmem:[#allocation3 + $0x28] sm:$0xff] %vm539, %v534
    %546 = vst.msk [vmem:[#allocation3 + $0x30] sm:$0xff] %vm539, %v536
    %547 = vst.msk [vmem:[#allocation3 + $0x38] sm:$0xff] %vm539, %v538
    %v548 = vld [vmem:[%s8] sm:$0xff]
    %v549 = vld [vmem:[%s8 + $0x8] sm:$0xff]
    %v550 = vld [vmem:[%s8 + $0x10] sm:$0xff]
    %v551 = vld [vmem:[%s8 + $0x18] sm:$0xff]
    %v552 = vld [vmem:[%s9] sm:$0xff]
    %v553 = vld [vmem:[%s9 + $0x8] sm:$0xff]
    %v554 = vld [vmem:[%s9 + $0x10] sm:$0xff]
    %v555 = vld [vmem:[%s9 + $0x18] sm:$0xff]
    %v556 = vld [vmem:[%s10] sm:$0x1]
    %v557 = vld [vmem:[#allocation2] sm:$0xff]
    %v558 = vld [vmem:[#allocation3] sm:$0xff]
    %v559 = vmul.f32 %v558, 0.0
    %v561 = vsel %vm539, %v559, 0
    %563 = vmatpush.msra.mxu0 0.0
    %564 = vmatpush.msra.mxu0 0.0
    %565 = vmatpush.msra.mxu0 0.0
    %566 = vmatpush.msra.mxu0 0.0
    %567 = vmatpush.msra.mxu0 0.0
    %568 = vmatpush.msra.mxu0 0.0
    %569 = vmatpush.msra.mxu0 0.0
    %570 = vmatpush.msra.mxu0 0.0
    %571 = vmatpush.msra.mxu0 0.0
    %572 = vmatpush.msra.mxu0 0.0
    %573 = vmatpush.msra.mxu0 0.0
    %574 = vmatpush.msra.mxu0 0.0
    %575 = vmatpush.msra.mxu0 %v551
    %576 = vmatpush.msra.mxu0 %v550
    %577 = vmatpush.msra.mxu0 %v549
    %578 = vmatpush.msra.mxu0 %v548
    %579 = vmatmul.f32.gmra.mxu0 %v561
    %v580 = vpop.f32.mrf.mxu0
    %v581 = vadd.f32 0.0, %v580
    %582 = vdwg.mxu0
    %v583 = vadd.f32 %v557, %v581
    %v584 = vxor.u32 %v583, 2147483648
    %v585 = vmul.f32 %v584, 1.442695
    %v586 = vpow.pop %v585
    %v587 = vadd.f32 %v586, 1.0
    %v588 = vrcp.pop %v587
    %v589 = vmul.f32 %v587, %v588
    %v590 = vsub.f32 1.0, %v589
    %v591 = vmul.f32 %v588, %v590
    %v592 = vadd.f32 %v588, %v591
    %vm593 = vweird.f32 %v587
    %vm594 = vweird.f32 %v588
    %vm595 = vmor %vm593, %vm594
    %v596 = vsel %vm595, %v588, %v592
    %v597 = vand.u32 2147483647, %v587
    %vm598 = vcmp.eq.f32.partialorder %v597, 8.507059e+37
    %v599 = vand.u32 %v587, 2147483648
    %v600 = vor.u32 1.1754944e-38, %v599
    %v601 = vsel %vm598, %v600, %v596
    %v602 = vmul.f32 1.0, %v601
    %603 = vrot.lane.b32.xlu0 %v559, 32
    %v604 = vpop.permute.xlu0 %603
    %v606 = vmul.f32 %v602, %v604
    %608 = vrot.lane.b32.xlu0 %v606, 96
    %v609 = vpop.permute.xlu0 %608
    %v610 = vsel %vm539, %v609, 0
    %612 = vmatpush.msra.mxu0 0.0
    %613 = vmatpush.msra.mxu0 0.0
    %614 = vmatpush.msra.mxu0 0.0
    %615 = vmatpush.msra.mxu0 0.0
    %616 = vmatpush.msra.mxu0 0.0
    %617 = vmatpush.msra.mxu0 0.0
    %618 = vmatpush.msra.mxu0 0.0
    %619 = vmatpush.msra.mxu0 0.0
    %620 = vmatpush.msra.mxu0 0.0
    %621 = vmatpush.msra.mxu0 0.0
    %622 = vmatpush.msra.mxu0 0.0
    %623 = vmatpush.msra.mxu0 0.0
    %624 = vmatpush.msra.mxu0 %v555
    %625 = vmatpush.msra.mxu0 %v554
    %626 = vmatpush.msra.mxu0 %v553
    %627 = vmatpush.msra.mxu0 %v552
    %628 = vmatmul.f32.gmra.mxu0 %v610
    %v629 = vpop.f32.mrf.mxu0
    %v630 = vadd.f32 0.0, %v629
    %631 = vdwg.mxu0
    %633 = vrot.lane.b32.xlu0 %v630, 64
    %v634 = vpop.permute.xlu0 %633
    %v636 = vadd.f32 %v557, %v634
    %v637 = vtanh.pop %v636
    %v638 = vsub.f32 1.0, %v602
    %v639 = vmul.f32 %v638, %v559
    %641 = vrot.lane.b32.xlu0 %v637, 64
    %v642 = vpop.permute.xlu0 %641
    %v644 = vmul.f32 %v602, %v642
    %v645 = vadd.f32 %v639, %v644
    %v647 = vperm.slane %v556, 0
    %v649 = vmul.f32 %v645, %v647
    %v650 = vsel %vm539, %v649, 0.0
    %651 = vadd.xlane.f32.xlu0 %v650
    %v652 = vpop.xlane.xlu0 %651
    %v653 = vsub.f32 -inf, %v652
    %v654 = vmul.f32 %v653, 1.442695
    %v655 = vpow.pop %v654
    %v656 = vsub.f32 %v652, %v652
    %v657 = vmul.f32 %v656, 1.442695
    %v658 = vpow.pop %v657
    %v659 = vmul.f32 %v655, 0.0
    %v660 = vadd.f32 %v659, %v658
    %v661 = vmul.f32 %v658, %v645
    %v662 = vadd.f32 %v659, %v661
    %s663 = scalar_lea.vmem [#allocation2], 8
    %v664 = vld [vmem:[%s663] sm:$0xff]
    %s665 = scalar_lea.vmem [#allocation3], 8
    %v666 = vld [vmem:[%s665] sm:$0xff]
    %v667 = vmul.f32 %v666, %v645
    %v669 = vsel %vm539, %v667, 0
    %671 = vmatpush.msra.mxu0 0.0
    %672 = vmatpush.msra.mxu0 0.0
    %673 = vmatpush.msra.mxu0 0.0
    %674 = vmatpush.msra.mxu0 0.0
    %675 = vmatpush.msra.mxu0 0.0
    %676 = vmatpush.msra.mxu0 0.0
    %677 = vmatpush.msra.mxu0 0.0
    %678 = vmatpush.msra.mxu0 0.0
    %679 = vmatpush.msra.mxu0 0.0
    %680 = vmatpush.msra.mxu0 0.0
    %681 = vmatpush.msra.mxu0 0.0
    %682 = vmatpush.msra.mxu0 0.0
    %683 = vmatpush.msra.mxu0 %v551
    %684 = vmatpush.msra.mxu0 %v550
    %685 = vmatpush.msra.mxu0 %v549
    %686 = vmatpush.msra.mxu0 %v548
    %687 = vmatmul.f32.gmra.mxu0 %v669
    %v688 = vpop.f32.mrf.mxu0
    %v689 = vadd.f32 0.0, %v688
    %690 = vdwg.mxu0
    %v691 = vadd.f32 %v664, %v689
    %v692 = vxor.u32 %v691, 2147483648
    %v693 = vmul.f32 %v692, 1.442695
    %v694 = vpow.pop %v693
    %v695 = vadd.f32 %v694, 1.0
    %v696 = vrcp.pop %v695
    %v697 = vmul.f32 %v695, %v696
    %v698 = vsub.f32 1.0, %v697
    %v699 = vmul.f32 %v696, %v698
    %v700 = vadd.f32 %v696, %v699
    %vm701 = vweird.f32 %v695
    %vm702 = vweird.f32 %v696
    %vm703 = vmor %vm701, %vm702
    %v704 = vsel %vm703, %v696, %v700
    %v705 = vand.u32 2147483647, %v695
    %vm706 = vcmp.eq.f32.partialorder %v705, 8.507059e+37
    %v707 = vand.u32 %v695, 2147483648
    %v708 = vor.u32 1.1754944e-38, %v707
    %v709 = vsel %vm706, %v708, %v704
    %v710 = vmul.f32 1.0, %v709
    %711 = vrot.lane.b32.xlu0 %v667, 32
    %v712 = vpop.permute.xlu0 %711
    %v714 = vmul.f32 %v710, %v712
    %716 = vrot.lane.b32.xlu0 %v714, 96
    %v717 = vpop.permute.xlu0 %716
    %v718 = vsel %vm539, %v717, 0
    %720 = vmatpush.msra.mxu0 0.0
    %721 = vmatpush.msra.mxu0 0.0
    %722 = vmatpush.msra.mxu0 0.0
    %723 = vmatpush.msra.mxu0 0.0
    %724 = vmatpush.msra.mxu0 0.0
    %725 = vmatpush.msra.mxu0 0.0
    %726 = vmatpush.msra.mxu0 0.0
    %727 = vmatpush.msra.mxu0 0.0
    %728 = vmatpush.msra.mxu0 0.0
    %729 = vmatpush.msra.mxu0 0.0
    %730 = vmatpush.msra.mxu0 0.0
    %731 = vmatpush.msra.mxu0 0.0
    %732 = vmatpush.msra.mxu0 %v555
    %733 = vmatpush.msra.mxu0 %v554
    %734 = vmatpush.msra.mxu0 %v553
    %735 = vmatpush.msra.mxu0 %v552
    %736 = vmatmul.f32.gmra.mxu0 %v718
    %v737 = vpop.f32.mrf.mxu0
    %v738 = vadd.f32 0.0, %v737
    %739 = vdwg.mxu0
    %741 = vrot.lane.b32.xlu0 %v738, 64
    %v742 = vpop.permute.xlu0 %741
    %v744 = vadd.f32 %v664, %v742
    %v745 = vtanh.pop %v744
    %v746 = vsub.f32 1.0, %v710
    %v747 = vmul.f32 %v746, %v667
    %749 = vrot.lane.b32.xlu0 %v745, 64
    %v750 = vpop.permute.xlu0 %749
    %v752 = vmul.f32 %v710, %v750
    %v753 = vadd.f32 %v747, %v752
    %v754 = vmul.f32 %v753, %v647
    %v755 = vsel %vm539, %v754, 0.0
    %756 = vadd.xlane.f32.xlu0 %v755
    %v757 = vpop.xlane.xlu0 %756
    %v758 = vmax.f32 %v652, %v757
    %v759 = vsub.f32 %v652, %v758
    %v760 = vmul.f32 %v759, 1.442695
    %v761 = vpow.pop %v760
    %v762 = vsub.f32 %v757, %v758
    %v763 = vmul.f32 %v762, 1.442695
    %v764 = vpow.pop %v763
    %v765 = vmul.f32 %v761, %v660
    %v766 = vadd.f32 %v765, %v764
    %v767 = vmul.f32 %v761, %v662
    %v768 = vmul.f32 %v764, %v753
    %v769 = vadd.f32 %v767, %v768
    %s770 = scalar_lea.vmem [#allocation2], 16
    %v771 = vld [vmem:[%s770] sm:$0xff]
    %s772 = scalar_lea.vmem [#allocation3], 16
    %v773 = vld [vmem:[%s772] sm:$0xff]
    %v774 = vmul.f32 %v773, %v753
    %v776 = vsel %vm539, %v774, 0
    %778 = vmatpush.msra.mxu0 0.0
    %779 = vmatpush.msra.mxu0 0.0
    %780 = vmatpush.msra.mxu0 0.0
    %781 = vmatpush.msra.mxu0 0.0
    %782 = vmatpush.msra.mxu0 0.0
    %783 = vmatpush.msra.mxu0 0.0
    %784 = vmatpush.msra.mxu0 0.0
    %785 = vmatpush.msra.mxu0 0.0
    %786 = vmatpush.msra.mxu0 0.0
    %787 = vmatpush.msra.mxu0 0.0
    %788 = vmatpush.msra.mxu0 0.0
    %789 = vmatpush.msra.mxu0 0.0
    %790 = vmatpush.msra.mxu0 %v551
    %791 = vmatpush.msra.mxu0 %v550
    %792 = vmatpush.msra.mxu0 %v549
    %793 = vmatpush.msra.mxu0 %v548
    %794 = vmatmul.f32.gmra.mxu0 %v776
    %v795 = vpop.f32.mrf.mxu0
    %v796 = vadd.f32 0.0, %v795
    %797 = vdwg.mxu0
    %v798 = vadd.f32 %v771, %v796
    %v799 = vxor.u32 %v798, 2147483648
    %v800 = vmul.f32 %v799, 1.442695
    %v801 = vpow.pop %v800
    %v802 = vadd.f32 %v801, 1.0
    %v803 = vrcp.pop %v802
    %v804 = vmul.f32 %v802, %v803
    %v805 = vsub.f32 1.0, %v804
    %v806 = vmul.f32 %v803, %v805
    %v807 = vadd.f32 %v803, %v806
    %vm808 = vweird.f32 %v802
    %vm809 = vweird.f32 %v803
    %vm810 = vmor %vm808, %vm809
    %v811 = vsel %vm810, %v803, %v807
    %v812 = vand.u32 2147483647, %v802
    %vm813 = vcmp.eq.f32.partialorder %v812, 8.507059e+37
    %v814 = vand.u32 %v802, 2147483648
    %v815 = vor.u32 1.1754944e-38, %v814
    %v816 = vsel %vm813, %v815, %v811
    %v817 = vmul.f32 1.0, %v816
    %818 = vrot.lane.b32.xlu0 %v774, 32
    %v819 = vpop.permute.xlu0 %818
    %v821 = vmul.f32 %v817, %v819
    %823 = vrot.lane.b32.xlu0 %v821, 96
    %v824 = vpop.permute.xlu0 %823
    %v825 = vsel %vm539, %v824, 0
    %827 = vmatpush.msra.mxu0 0.0
    %828 = vmatpush.msra.mxu0 0.0
    %829 = vmatpush.msra.mxu0 0.0
    %830 = vmatpush.msra.mxu0 0.0
    %831 = vmatpush.msra.mxu0 0.0
    %832 = vmatpush.msra.mxu0 0.0
    %833 = vmatpush.msra.mxu0 0.0
    %834 = vmatpush.msra.mxu0 0.0
    %835 = vmatpush.msra.mxu0 0.0
    %836 = vmatpush.msra.mxu0 0.0
    %837 = vmatpush.msra.mxu0 0.0
    %838 = vmatpush.msra.mxu0 0.0
    %839 = vmatpush.msra.mxu0 %v555
    %840 = vmatpush.msra.mxu0 %v554
    %841 = vmatpush.msra.mxu0 %v553
    %842 = vmatpush.msra.mxu0 %v552
    %843 = vmatmul.f32.gmra.mxu0 %v825
    %v844 = vpop.f32.mrf.mxu0
    %v845 = vadd.f32 0.0, %v844
    %846 = vdwg.mxu0
    %848 = vrot.lane.b32.xlu0 %v845, 64
    %v849 = vpop.permute.xlu0 %848
    %v851 = vadd.f32 %v771, %v849
    %v852 = vtanh.pop %v851
    %v853 = vsub.f32 1.0, %v817
    %v854 = vmul.f32 %v853, %v774
    %856 = vrot.lane.b32.xlu0 %v852, 64
    %v857 = vpop.permute.xlu0 %856
    %v859 = vmul.f32 %v817, %v857
    %v860 = vadd.f32 %v854, %v859
    %v861 = vmul.f32 %v860, %v647
    %v862 = vsel %vm539, %v861, 0.0
    %863 = vadd.xlane.f32.xlu0 %v862
    %v864 = vpop.xlane.xlu0 %863
    %v865 = vmax.f32 %v758, %v864
    %v866 = vsub.f32 %v758, %v865
    %v867 = vmul.f32 %v866, 1.442695
    %v868 = vpow.pop %v867
    %v869 = vsub.f32 %v864, %v865
    %v870 = vmul.f32 %v869, 1.442695
    %v871 = vpow.pop %v870
    %v872 = vmul.f32 %v868, %v766
    %v873 = vadd.f32 %v872, %v871
    %v874 = vmul.f32 %v868, %v769
    %v875 = vmul.f32 %v871, %v860
    %v876 = vadd.f32 %v874, %v875
    %s877 = scalar_lea.vmem [#allocation2], 24
    %v878 = vld [vmem:[%s877] sm:$0xff]
    %s879 = scalar_lea.vmem [#allocation3], 24
    %v880 = vld [vmem:[%s879] sm:$0xff]
    %v881 = vmul.f32 %v880, %v860
    %v883 = vsel %vm539, %v881, 0
    %885 = vmatpush.msra.mxu0 0.0
    %886 = vmatpush.msra.mxu0 0.0
    %887 = vmatpush.msra.mxu0 0.0
    %888 = vmatpush.msra.mxu0 0.0
    %889 = vmatpush.msra.mxu0 0.0
    %890 = vmatpush.msra.mxu0 0.0
    %891 = vmatpush.msra.mxu0 0.0
    %892 = vmatpush.msra.mxu0 0.0
    %893 = vmatpush.msra.mxu0 0.0
    %894 = vmatpush.msra.mxu0 0.0
    %895 = vmatpush.msra.mxu0 0.0
    %896 = vmatpush.msra.mxu0 0.0
    %897 = vmatpush.msra.mxu0 %v551
    %898 = vmatpush.msra.mxu0 %v550
    %899 = vmatpush.msra.mxu0 %v549
    %900 = vmatpush.msra.mxu0 %v548
    %901 = vmatmul.f32.gmra.mxu0 %v883
    %v902 = vpop.f32.mrf.mxu0
    %v903 = vadd.f32 0.0, %v902
    %904 = vdwg.mxu0
    %v905 = vadd.f32 %v878, %v903
    %v906 = vxor.u32 %v905, 2147483648
    %v907 = vmul.f32 %v906, 1.442695
    %v908 = vpow.pop %v907
    %v909 = vadd.f32 %v908, 1.0
    %v910 = vrcp.pop %v909
    %v911 = vmul.f32 %v909, %v910
    %v912 = vsub.f32 1.0, %v911
    %v913 = vmul.f32 %v910, %v912
    %v914 = vadd.f32 %v910, %v913
    %vm915 = vweird.f32 %v909
    %vm916 = vweird.f32 %v910
    %vm917 = vmor %vm915, %vm916
    %v918 = vsel %vm917, %v910, %v914
    %v919 = vand.u32 2147483647, %v909
    %vm920 = vcmp.eq.f32.partialorder %v919, 8.507059e+37
    %v921 = vand.u32 %v909, 2147483648
    %v922 = vor.u32 1.1754944e-38, %v921
    %v923 = vsel %vm920, %v922, %v918
    %v924 = vmul.f32 1.0, %v923
    %925 = vrot.lane.b32.xlu0 %v881, 32
    %v926 = vpop.permute.xlu0 %925
    %v928 = vmul.f32 %v924, %v926
    %930 = vrot.lane.b32.xlu0 %v928, 96
    %v931 = vpop.permute.xlu0 %930
    %v932 = vsel %vm539, %v931, 0
    %934 = vmatpush.msra.mxu0 0.0
    %935 = vmatpush.msra.mxu0 0.0
    %936 = vmatpush.msra.mxu0 0.0
    %937 = vmatpush.msra.mxu0 0.0
    %938 = vmatpush.msra.mxu0 0.0
    %939 = vmatpush.msra.mxu0 0.0
    %940 = vmatpush.msra.mxu0 0.0
    %941 = vmatpush.msra.mxu0 0.0
    %942 = vmatpush.msra.mxu0 0.0
    %943 = vmatpush.msra.mxu0 0.0
    %944 = vmatpush.msra.mxu0 0.0
    %945 = vmatpush.msra.mxu0 0.0
    %946 = vmatpush.msra.mxu0 %v555
    %947 = vmatpush.msra.mxu0 %v554
    %948 = vmatpush.msra.mxu0 %v553
    %949 = vmatpush.msra.mxu0 %v552
    %950 = vmatmul.f32.gmra.mxu0 %v932
    %v951 = vpop.f32.mrf.mxu0
    %v952 = vadd.f32 0.0, %v951
    %953 = vdwg.mxu0
    %955 = vrot.lane.b32.xlu0 %v952, 64
    %v956 = vpop.permute.xlu0 %955
    %v958 = vadd.f32 %v878, %v956
    %v959 = vtanh.pop %v958
    %v960 = vsub.f32 1.0, %v924
    %v961 = vmul.f32 %v960, %v881
    %963 = vrot.lane.b32.xlu0 %v959, 64
    %v964 = vpop.permute.xlu0 %963
    %v966 = vmul.f32 %v924, %v964
    %v967 = vadd.f32 %v961, %v966
    %v968 = vmul.f32 %v967, %v647
    %v969 = vsel %vm539, %v968, 0.0
    %970 = vadd.xlane.f32.xlu0 %v969
    %v971 = vpop.xlane.xlu0 %970
    %v972 = vmax.f32 %v865, %v971
    %v973 = vsub.f32 %v865, %v972
    %v974 = vmul.f32 %v973, 1.442695
    %v975 = vpow.pop %v974
    %v976 = vsub.f32 %v971, %v972
    %v977 = vmul.f32 %v976, 1.442695
    %v978 = vpow.pop %v977
    %v979 = vmul.f32 %v975, %v873
    %v980 = vadd.f32 %v979, %v978
    %v981 = vmul.f32 %v975, %v876
    %v982 = vmul.f32 %v978, %v967
    %v983 = vadd.f32 %v981, %v982
    %s984 = scalar_lea.vmem [#allocation2], 32
    %v985 = vld [vmem:[%s984] sm:$0xff]
    %s986 = scalar_lea.vmem [#allocation3], 32
    %v987 = vld [vmem:[%s986] sm:$0xff]
    %v988 = vmul.f32 %v987, %v967
    %v990 = vsel %vm539, %v988, 0
    %992 = vmatpush.msra.mxu0 0.0
    %993 = vmatpush.msra.mxu0 0.0
    %994 = vmatpush.msra.mxu0 0.0
    %995 = vmatpush.msra.mxu0 0.0
    %996 = vmatpush.msra.mxu0 0.0
    %997 = vmatpush.msra.mxu0 0.0
    %998 = vmatpush.msra.mxu0 0.0
    %999 = vmatpush.msra.mxu0 0.0
    %1000 = vmatpush.msra.mxu0 0.0
    %1001 = vmatpush.msra.mxu0 0.0
    %1002 = vmatpush.msra.mxu0 0.0
    %1003 = vmatpush.msra.mxu0 0.0
    %1004 = vmatpush.msra.mxu0 %v551
    %1005 = vmatpush.msra.mxu0 %v550
    %1006 = vmatpush.msra.mxu0 %v549
    %1007 = vmatpush.msra.mxu0 %v548
    %1008 = vmatmul.f32.gmra.mxu0 %v990
    %v1009 = vpop.f32.mrf.mxu0
    %v1010 = vadd.f32 0.0, %v1009
    %1011 = vdwg.mxu0
    %v1012 = vadd.f32 %v985, %v1010
    %v1013 = vxor.u32 %v1012, 2147483648
    %v1014 = vmul.f32 %v1013, 1.442695
    %v1015 = vpow.pop %v1014
    %v1016 = vadd.f32 %v1015, 1.0
    %v1017 = vrcp.pop %v1016
    %v1018 = vmul.f32 %v1016, %v1017
    %v1019 = vsub.f32 1.0, %v1018
    %v1020 = vmul.f32 %v1017, %v1019
    %v1021 = vadd.f32 %v1017, %v1020
    %vm1022 = vweird.f32 %v1016
    %vm1023 = vweird.f32 %v1017
    %vm1024 = vmor %vm1022, %vm1023
    %v1025 = vsel %vm1024, %v1017, %v1021
    %v1026 = vand.u32 2147483647, %v1016
    %vm1027 = vcmp.eq.f32.partialorder %v1026, 8.507059e+37
    %v1028 = vand.u32 %v1016, 2147483648
    %v1029 = vor.u32 1.1754944e-38, %v1028
    %v1030 = vsel %vm1027, %v1029, %v1025
    %v1031 = vmul.f32 1.0, %v1030
    %1032 = vrot.lane.b32.xlu0 %v988, 32
    %v1033 = vpop.permute.xlu0 %1032
    %v1035 = vmul.f32 %v1031, %v1033
    %1037 = vrot.lane.b32.xlu0 %v1035, 96
    %v1038 = vpop.permute.xlu0 %1037
    %v1039 = vsel %vm539, %v1038, 0
    %1041 = vmatpush.msra.mxu0 0.0
    %1042 = vmatpush.msra.mxu0 0.0
    %1043 = vmatpush.msra.mxu0 0.0
    %1044 = vmatpush.msra.mxu0 0.0
    %1045 = vmatpush.msra.mxu0 0.0
    %1046 = vmatpush.msra.mxu0 0.0
    %1047 = vmatpush.msra.mxu0 0.0
    %1048 = vmatpush.msra.mxu0 0.0
    %1049 = vmatpush.msra.mxu0 0.0
    %1050 = vmatpush.msra.mxu0 0.0
    %1051 = vmatpush.msra.mxu0 0.0
    %1052 = vmatpush.msra.mxu0 0.0
    %1053 = vmatpush.msra.mxu0 %v555
    %1054 = vmatpush.msra.mxu0 %v554
    %1055 = vmatpush.msra.mxu0 %v553
    %1056 = vmatpush.msra.mxu0 %v552
    %1057 = vmatmul.f32.gmra.mxu0 %v1039
    %v1058 = vpop.f32.mrf.mxu0
    %v1059 = vadd.f32 0.0, %v1058
    %1060 = vdwg.mxu0
    %1062 = vrot.lane.b32.xlu0 %v1059, 64
    %v1063 = vpop.permute.xlu0 %1062
    %v1065 = vadd.f32 %v985, %v1063
    %v1066 = vtanh.pop %v1065
    %v1067 = vsub.f32 1.0, %v1031
    %v1068 = vmul.f32 %v1067, %v988
    %1070 = vrot.lane.b32.xlu0 %v1066, 64
    %v1071 = vpop.permute.xlu0 %1070
    %v1073 = vmul.f32 %v1031, %v1071
    %v1074 = vadd.f32 %v1068, %v1073
    %v1075 = vmul.f32 %v1074, %v647
    %v1076 = vsel %vm539, %v1075, 0.0
    %1077 = vadd.xlane.f32.xlu0 %v1076
    %v1078 = vpop.xlane.xlu0 %1077
    %v1079 = vmax.f32 %v972, %v1078
    %v1080 = vsub.f32 %v972, %v1079
    %v1081 = vmul.f32 %v1080, 1.442695
    %v1082 = vpow.pop %v1081
    %v1083 = vsub.f32 %v1078, %v1079
    %v1084 = vmul.f32 %v1083, 1.442695
    %v1085 = vpow.pop %v1084
    %v1086 = vmul.f32 %v1082, %v980
    %v1087 = vadd.f32 %v1086, %v1085
    %v1088 = vmul.f32 %v1082, %v983
    %v1089 = vmul.f32 %v1085, %v1074
    %v1090 = vadd.f32 %v1088, %v1089
    %s1091 = scalar_lea.vmem [#allocation2], 40
    %v1092 = vld [vmem:[%s1091] sm:$0xff]
    %s1093 = scalar_lea.vmem [#allocation3], 40
    %v1094 = vld [vmem:[%s1093] sm:$0xff]
    %v1095 = vmul.f32 %v1094, %v1074
    %v1097 = vsel %vm539, %v1095, 0
    %1099 = vmatpush.msra.mxu0 0.0
    %1100 = vmatpush.msra.mxu0 0.0
    %1101 = vmatpush.msra.mxu0 0.0
    %1102 = vmatpush.msra.mxu0 0.0
    %1103 = vmatpush.msra.mxu0 0.0
    %1104 = vmatpush.msra.mxu0 0.0
    %1105 = vmatpush.msra.mxu0 0.0
    %1106 = vmatpush.msra.mxu0 0.0
    %1107 = vmatpush.msra.mxu0 0.0
    %1108 = vmatpush.msra.mxu0 0.0
    %1109 = vmatpush.msra.mxu0 0.0
    %1110 = vmatpush.msra.mxu0 0.0
    %1111 = vmatpush.msra.mxu0 %v551
    %1112 = vmatpush.msra.mxu0 %v550
    %1113 = vmatpush.msra.mxu0 %v549
    %1114 = vmatpush.msra.mxu0 %v548
    %1115 = vmatmul.f32.gmra.mxu0 %v1097
    %v1116 = vpop.f32.mrf.mxu0
    %v1117 = vadd.f32 0.0, %v1116
    %1118 = vdwg.mxu0
    %v1119 = vadd.f32 %v1092, %v1117
    %v1120 = vxor.u32 %v1119, 2147483648
    %v1121 = vmul.f32 %v1120, 1.442695
    %v1122 = vpow.pop %v1121
    %v1123 = vadd.f32 %v1122, 1.0
    %v1124 = vrcp.pop %v1123
    %v1125 = vmul.f32 %v1123, %v1124
    %v1126 = vsub.f32 1.0, %v1125
    %v1127 = vmul.f32 %v1124, %v1126
    %v1128 = vadd.f32 %v1124, %v1127
    %vm1129 = vweird.f32 %v1123
    %vm1130 = vweird.f32 %v1124
    %vm1131 = vmor %vm1129, %vm1130
    %v1132 = vsel %vm1131, %v1124, %v1128
    %v1133 = vand.u32 2147483647, %v1123
    %vm1134 = vcmp.eq.f32.partialorder %v1133, 8.507059e+37
    %v1135 = vand.u32 %v1123, 2147483648
    %v1136 = vor.u32 1.1754944e-38, %v1135
    %v1137 = vsel %vm1134, %v1136, %v1132
    %v1138 = vmul.f32 1.0, %v1137
    %1139 = vrot.lane.b32.xlu0 %v1095, 32
    %v1140 = vpop.permute.xlu0 %1139
    %v1142 = vmul.f32 %v1138, %v1140
    %1144 = vrot.lane.b32.xlu0 %v1142, 96
    %v1145 = vpop.permute.xlu0 %1144
    %v1146 = vsel %vm539, %v1145, 0
    %1148 = vmatpush.msra.mxu0 0.0
    %1149 = vmatpush.msra.mxu0 0.0
    %1150 = vmatpush.msra.mxu0 0.0
    %1151 = vmatpush.msra.mxu0 0.0
    %1152 = vmatpush.msra.mxu0 0.0
    %1153 = vmatpush.msra.mxu0 0.0
    %1154 = vmatpush.msra.mxu0 0.0
    %1155 = vmatpush.msra.mxu0 0.0
    %1156 = vmatpush.msra.mxu0 0.0
    %1157 = vmatpush.msra.mxu0 0.0
    %1158 = vmatpush.msra.mxu0 0.0
    %1159 = vmatpush.msra.mxu0 0.0
    %1160 = vmatpush.msra.mxu0 %v555
    %1161 = vmatpush.msra.mxu0 %v554
    %1162 = vmatpush.msra.mxu0 %v553
    %1163 = vmatpush.msra.mxu0 %v552
    %1164 = vmatmul.f32.gmra.mxu0 %v1146
    %v1165 = vpop.f32.mrf.mxu0
    %v1166 = vadd.f32 0.0, %v1165
    %1167 = vdwg.mxu0
    %1169 = vrot.lane.b32.xlu0 %v1166, 64
    %v1170 = vpop.permute.xlu0 %1169
    %v1172 = vadd.f32 %v1092, %v1170
    %v1173 = vtanh.pop %v1172
    %v1174 = vsub.f32 1.0, %v1138
    %v1175 = vmul.f32 %v1174, %v1095
    %1177 = vrot.lane.b32.xlu0 %v1173, 64
    %v1178 = vpop.permute.xlu0 %1177
    %v1180 = vmul.f32 %v1138, %v1178
    %v1181 = vadd.f32 %v1175, %v1180
    %v1182 = vmul.f32 %v1181, %v647
    %v1183 = vsel %vm539, %v1182, 0.0
    %1184 = vadd.xlane.f32.xlu0 %v1183
    %v1185 = vpop.xlane.xlu0 %1184
    %v1186 = vmax.f32 %v1079, %v1185
    %v1187 = vsub.f32 %v1079, %v1186
    %v1188 = vmul.f32 %v1187, 1.442695
    %v1189 = vpow.pop %v1188
    %v1190 = vsub.f32 %v1185, %v1186
    %v1191 = vmul.f32 %v1190, 1.442695
    %v1192 = vpow.pop %v1191
    %v1193 = vmul.f32 %v1189, %v1087
    %v1194 = vadd.f32 %v1193, %v1192
    %v1195 = vmul.f32 %v1189, %v1090
    %v1196 = vmul.f32 %v1192, %v1181
    %v1197 = vadd.f32 %v1195, %v1196
    %s1198 = scalar_lea.vmem [#allocation2], 48
    %v1199 = vld [vmem:[%s1198] sm:$0xff]
    %s1200 = scalar_lea.vmem [#allocation3], 48
    %v1201 = vld [vmem:[%s1200] sm:$0xff]
    %v1202 = vmul.f32 %v1201, %v1181
    %v1204 = vsel %vm539, %v1202, 0
    %1206 = vmatpush.msra.mxu0 0.0
    %1207 = vmatpush.msra.mxu0 0.0
    %1208 = vmatpush.msra.mxu0 0.0
    %1209 = vmatpush.msra.mxu0 0.0
    %1210 = vmatpush.msra.mxu0 0.0
    %1211 = vmatpush.msra.mxu0 0.0
    %1212 = vmatpush.msra.mxu0 0.0
    %1213 = vmatpush.msra.mxu0 0.0
    %1214 = vmatpush.msra.mxu0 0.0
    %1215 = vmatpush.msra.mxu0 0.0
    %1216 = vmatpush.msra.mxu0 0.0
    %1217 = vmatpush.msra.mxu0 0.0
    %1218 = vmatpush.msra.mxu0 %v551
    %1219 = vmatpush.msra.mxu0 %v550
    %1220 = vmatpush.msra.mxu0 %v549
    %1221 = vmatpush.msra.mxu0 %v548
    %1222 = vmatmul.f32.gmra.mxu0 %v1204
    %v1223 = vpop.f32.mrf.mxu0
    %v1224 = vadd.f32 0.0, %v1223
    %1225 = vdwg.mxu0
    %v1226 = vadd.f32 %v1199, %v1224
    %v1227 = vxor.u32 %v1226, 2147483648
    %v1228 = vmul.f32 %v1227, 1.442695
    %v1229 = vpow.pop %v1228
    %v1230 = vadd.f32 %v1229, 1.0
    %v1231 = vrcp.pop %v1230
    %v1232 = vmul.f32 %v1230, %v1231
    %v1233 = vsub.f32 1.0, %v1232
    %v1234 = vmul.f32 %v1231, %v1233
    %v1235 = vadd.f32 %v1231, %v1234
    %vm1236 = vweird.f32 %v1230
    %vm1237 = vweird.f32 %v1231
    %vm1238 = vmor %vm1236, %vm1237
    %v1239 = vsel %vm1238, %v1231, %v1235
    %v1240 = vand.u32 2147483647, %v1230
    %vm1241 = vcmp.eq.f32.partialorder %v1240, 8.507059e+37
    %v1242 = vand.u32 %v1230, 2147483648
    %v1243 = vor.u32 1.1754944e-38, %v1242
    %v1244 = vsel %vm1241, %v1243, %v1239
    %v1245 = vmul.f32 1.0, %v1244
    %1246 = vrot.lane.b32.xlu0 %v1202, 32
    %v1247 = vpop.permute.xlu0 %1246
    %v1249 = vmul.f32 %v1245, %v1247
    %1251 = vrot.lane.b32.xlu0 %v1249, 96
    %v1252 = vpop.permute.xlu0 %1251
    %v1253 = vsel %vm539, %v1252, 0
    %1255 = vmatpush.msra.mxu0 0.0
    %1256 = vmatpush.msra.mxu0 0.0
    %1257 = vmatpush.msra.mxu0 0.0
    %1258 = vmatpush.msra.mxu0 0.0
    %1259 = vmatpush.msra.mxu0 0.0
    %1260 = vmatpush.msra.mxu0 0.0
    %1261 = vmatpush.msra.mxu0 0.0
    %1262 = vmatpush.msra.mxu0 0.0
    %1263 = vmatpush.msra.mxu0 0.0
    %1264 = vmatpush.msra.mxu0 0.0
    %1265 = vmatpush.msra.mxu0 0.0
    %1266 = vmatpush.msra.mxu0 0.0
    %1267 = vmatpush.msra.mxu0 %v555
    %1268 = vmatpush.msra.mxu0 %v554
    %1269 = vmatpush.msra.mxu0 %v553
    %1270 = vmatpush.msra.mxu0 %v552
    %1271 = vmatmul.f32.gmra.mxu0 %v1253
    %v1272 = vpop.f32.mrf.mxu0
    %v1273 = vadd.f32 0.0, %v1272
    %1274 = vdwg.mxu0
    %1276 = vrot.lane.b32.xlu0 %v1273, 64
    %v1277 = vpop.permute.xlu0 %1276
    %v1279 = vadd.f32 %v1199, %v1277
    %v1280 = vtanh.pop %v1279
    %v1281 = vsub.f32 1.0, %v1245
    %v1282 = vmul.f32 %v1281, %v1202
    %1284 = vrot.lane.b32.xlu0 %v1280, 64
    %v1285 = vpop.permute.xlu0 %1284
    %v1287 = vmul.f32 %v1245, %v1285
    %v1288 = vadd.f32 %v1282, %v1287
    %v1289 = vmul.f32 %v1288, %v647
    %v1290 = vsel %vm539, %v1289, 0.0
    %1291 = vadd.xlane.f32.xlu0 %v1290
    %v1292 = vpop.xlane.xlu0 %1291
    %v1293 = vmax.f32 %v1186, %v1292
    %v1294 = vsub.f32 %v1186, %v1293
    %v1295 = vmul.f32 %v1294, 1.442695
    %v1296 = vpow.pop %v1295
    %v1297 = vsub.f32 %v1292, %v1293
    %v1298 = vmul.f32 %v1297, 1.442695
    %v1299 = vpow.pop %v1298
    %v1300 = vmul.f32 %v1296, %v1194
    %v1301 = vadd.f32 %v1300, %v1299
    %v1302 = vmul.f32 %v1296, %v1197
    %v1303 = vmul.f32 %v1299, %v1288
    %v1304 = vadd.f32 %v1302, %v1303
    %s1305 = scalar_lea.vmem [#allocation2], 56
    %v1306 = vld [vmem:[%s1305] sm:$0xff]
    %s1307 = scalar_lea.vmem [#allocation3], 56
    %v1308 = vld [vmem:[%s1307] sm:$0xff]
    %v1309 = vmul.f32 %v1308, %v1288
    %v1311 = vsel %vm539, %v1309, 0
    %1313 = vmatpush.msra.mxu0 0.0
    %1314 = vmatpush.msra.mxu0 0.0
    %1315 = vmatpush.msra.mxu0 0.0
    %1316 = vmatpush.msra.mxu0 0.0
    %1317 = vmatpush.msra.mxu0 0.0
    %1318 = vmatpush.msra.mxu0 0.0
    %1319 = vmatpush.msra.mxu0 0.0
    %1320 = vmatpush.msra.mxu0 0.0
    %1321 = vmatpush.msra.mxu0 0.0
    %1322 = vmatpush.msra.mxu0 0.0
    %1323 = vmatpush.msra.mxu0 0.0
    %1324 = vmatpush.msra.mxu0 0.0
    %1325 = vmatpush.msra.mxu0 %v551
    %1326 = vmatpush.msra.mxu0 %v550
    %1327 = vmatpush.msra.mxu0 %v549
    %1328 = vmatpush.msra.mxu0 %v548
    %1329 = vmatmul.f32.gmra.mxu0 %v1311
    %v1330 = vpop.f32.mrf.mxu0
    %v1331 = vadd.f32 0.0, %v1330
    %1332 = vdwg.mxu0
    %v1333 = vadd.f32 %v1306, %v1331
    %v1334 = vxor.u32 %v1333, 2147483648
    %v1335 = vmul.f32 %v1334, 1.442695
    %v1336 = vpow.pop %v1335
    %v1337 = vadd.f32 %v1336, 1.0
    %v1338 = vrcp.pop %v1337
    %v1339 = vmul.f32 %v1337, %v1338
    %v1340 = vsub.f32 1.0, %v1339
    %v1341 = vmul.f32 %v1338, %v1340
    %v1342 = vadd.f32 %v1338, %v1341
    %vm1343 = vweird.f32 %v1337
    %vm1344 = vweird.f32 %v1338
    %vm1345 = vmor %vm1343, %vm1344
    %v1346 = vsel %vm1345, %v1338, %v1342
    %v1347 = vand.u32 2147483647, %v1337
    %vm1348 = vcmp.eq.f32.partialorder %v1347, 8.507059e+37
    %v1349 = vand.u32 %v1337, 2147483648
    %v1350 = vor.u32 1.1754944e-38, %v1349
    %v1351 = vsel %vm1348, %v1350, %v1346
    %v1352 = vmul.f32 1.0, %v1351
    %1353 = vrot.lane.b32.xlu0 %v1309, 32
    %v1354 = vpop.permute.xlu0 %1353
    %v1356 = vmul.f32 %v1352, %v1354
    %1358 = vrot.lane.b32.xlu0 %v1356, 96
    %v1359 = vpop.permute.xlu0 %1358
    %v1360 = vsel %vm539, %v1359, 0
    %1362 = vmatpush.msra.mxu0 0.0
    %1363 = vmatpush.msra.mxu0 0.0
    %1364 = vmatpush.msra.mxu0 0.0
    %1365 = vmatpush.msra.mxu0 0.0
    %1366 = vmatpush.msra.mxu0 0.0
    %1367 = vmatpush.msra.mxu0 0.0
    %1368 = vmatpush.msra.mxu0 0.0
    %1369 = vmatpush.msra.mxu0 0.0
    %1370 = vmatpush.msra.mxu0 0.0
    %1371 = vmatpush.msra.mxu0 0.0
    %1372 = vmatpush.msra.mxu0 0.0
    %1373 = vmatpush.msra.mxu0 0.0
    %1374 = vmatpush.msra.mxu0 %v555
    %1375 = vmatpush.msra.mxu0 %v554
    %1376 = vmatpush.msra.mxu0 %v553
    %1377 = vmatpush.msra.mxu0 %v552
    %1378 = vmatmul.f32.gmra.mxu0 %v1360
    %v1379 = vpop.f32.mrf.mxu0
    %v1380 = vadd.f32 0.0, %v1379
    %1381 = vdwg.mxu0
    %1383 = vrot.lane.b32.xlu0 %v1380, 64
    %v1384 = vpop.permute.xlu0 %1383
    %v1386 = vadd.f32 %v1306, %v1384
    %v1387 = vtanh.pop %v1386
    %v1388 = vsub.f32 1.0, %v1352
    %v1389 = vmul.f32 %v1388, %v1309
    %1391 = vrot.lane.b32.xlu0 %v1387, 64
    %v1392 = vpop.permute.xlu0 %1391
    %v1394 = vmul.f32 %v1352, %v1392
    %v1395 = vadd.f32 %v1389, %v1394
    %v1396 = vmul.f32 %v1395, %v647
    %v1397 = vsel %vm539, %v1396, 0.0
    %1398 = vadd.xlane.f32.xlu0 %v1397
    %v1399 = vpop.xlane.xlu0 %1398
    %v1400 = vmax.f32 %v1293, %v1399
    %v1401 = vsub.f32 %v1293, %v1400
    %v1402 = vmul.f32 %v1401, 1.442695
    %v1403 = vpow.pop %v1402
    %v1404 = vsub.f32 %v1399, %v1400
    %v1405 = vmul.f32 %v1404, 1.442695
    %v1406 = vpow.pop %v1405
    %v1407 = vmul.f32 %v1403, %v1301
    %v1408 = vadd.f32 %v1407, %v1406
    %v1409 = vmul.f32 %v1403, %v1304
    %v1410 = vmul.f32 %v1406, %v1395
    %v1411 = vadd.f32 %v1409, %v1410
    %v1412 = vrcp.pop %v1408
    %v1413 = vmul.f32 %v1411, %v1412
    %1414 = vst.msk [vmem:[#allocation4] sm:$0xff] %vm539, %v1413
    // Predicated region
    $region46: #{grud_encoder_forward.1} parent=1 // pred_check
      _
    $region47: #{grud_encoder_forward.1} parent=1 // pred_check_branch
      %1416 = sbr.rel (0) target = $region49
    $region48: #{grud_encoder_forward.1} parent=1 // pred_region
      %1418 = vsyncadd [#allocation5], 0
      %s1420 = sshll.u32 [#allocation4], 4
      %s1421 = int_to_ptr.vmem [resolvable:$true] %s1420
      %s1422 = sshll.u32 %s11, 4
      %s1423 = int_to_ptr.hbm [resolvable:$true] %s1422
      %1425 = dma.vmem_to_hbm [thread:$0]  %s1421, 128, %s1423, [#allocation5]
    $region49: #{grud_encoder_forward.1} parent=1 // pred_fallthru
      _
    // Predicated region
    $region50: #{grud_encoder_forward.1} parent=1 // pred_check
      _
    $region51: #{grud_encoder_forward.1} parent=1 // pred_check_branch
      %1427 = sbr.rel (0) target = $region53
    $region52: #{grud_encoder_forward.1} parent=1 // pred_region
      %1429 = dma.done [#allocation5], 128
    $region53: #{grud_encoder_forward.1} parent=1 // pred_fallthru
      _
    %1430 = vsyncpa [#allocation5], 1

</llo_original>
